<compile_context>
chip_gen: v7x
topology: tpu7x:2x2x1
jax: 0.10.0
libtpu: 0.0.40
codegen_flags: <defaults>
</compile_context>

<pallas_src>
import functools

import jax
import jax.numpy as jnp
import numpy as np
from jax.experimental import pallas as pl
from jax.experimental.pallas import tpu as pltpu

LN_EPS = 1e-5  # torch.nn.LayerNorm default


def _layernorm(y, gamma, beta):
    mu = jnp.mean(y, axis=-1, keepdims=True)
    var = jnp.mean((y - mu) ** 2, axis=-1, keepdims=True)
    return (y - mu) * jax.lax.rsqrt(var + LN_EPS) * gamma + beta


def encode_block_kernel(
    # inputs (refs)
    x_ref,
    wqkv_ref, bqkv_ref, hmask_ref,
    wp_ref, bp_ref,
    g1_ref, be1_ref,
    w1_ref, b1_ref, w2_ref, b2_ref,
    gff_ref, bff_ref,
    g2_ref, be2_ref,
    # outputs (refs)
    out_ref, k_out_ref, v_out_ref,
    *, n_embd,
):
    C = n_embd
    x = x_ref[...]  # (T, C) — rows belonging to one batch element

    # Fused QKV projection: one (T, C) @ (C, 3C) MXU matmul + one bias pass.
    qkv = jnp.dot(x, wqkv_ref[...], preferred_element_type=jnp.float32) + bqkv_ref[...]
    Q = qkv[:, :C]
    K = qkv[:, C:2 * C]
    V = qkv[:, 2 * C:]

    # Softmax-free attention via associativity + block-diagonal head mask.
    # hmask[i, j] = head_size**-0.5 if i, j are in the same head, else 0, so
    #   Q @ (hmask * (K^T V)) == concat_h[(Q_h K_h^T * s) V_h]
    # exactly (up to f32 reassociation). K^T V contracts over T (dim 0 of both).
    kv = jax.lax.dot_general(
        K, V, dimension_numbers=(((0,), (0,)), ((), ())),
        preferred_element_type=jnp.float32)                    # (C, C) == K^T @ V
    att = jnp.dot(Q, kv * hmask_ref[...], preferred_element_type=jnp.float32)

    # Output projection + residual + LayerNorm 1.
    proj = jnp.dot(att, wp_ref[...], preferred_element_type=jnp.float32) + bp_ref[...]
    out1 = _layernorm(x + proj, g1_ref[...], be1_ref[...])

    # FeedForward: Linear(C,4C) -> ReLU -> Linear(4C,C); FeedForward's own
    # LayerNorm over (out1 + net(out1)), then the block's residual + LayerNorm 2.
    h1 = jnp.dot(out1, w1_ref[...], preferred_element_type=jnp.float32) + b1_ref[...]
    h1 = jnp.maximum(h1, 0.0)
    ff = jnp.dot(h1, w2_ref[...], preferred_element_type=jnp.float32) + b2_ref[...]
    ff_ln = _layernorm(out1 + ff, gff_ref[...], bff_ref[...])

    out_ref[...] = _layernorm(out1 + ff_ln, g2_ref[...], be2_ref[...])
    k_out_ref[...] = K
    v_out_ref[...] = V


def encode_block(x, params, *, num_heads):
    B, T, C = x.shape
    head_size = C // num_heads

    # --- wrapper-side constant packing (no per-element runtime cost) ---
    wqkv = jnp.concatenate([params["wq"], params["wk"], params["wv"]], axis=1)  # (C, 3C)
    bqkv = jnp.concatenate([params["bq"], params["bk"], params["bv"]], axis=1)  # (1, 3C)

    head_id = np.arange(C) // head_size
    hmask_np = (head_id[:, None] == head_id[None, :]).astype(np.float32)
    hmask = jnp.asarray(hmask_np * float(head_size) ** -0.5)                    # (C, C)

    # Fold batch into rows; the grid splits the slab into B batch-aligned row
    # blocks (keeps a >=2-way parallel axis for v7x's two TensorCores).
    x_flat = x.reshape(B * T, C)

    weights = [
        wqkv, bqkv, hmask,
        params["wp"], params["bp"],
        params["g1"], params["be1"],
        params["w1"], params["b1"], params["w2"], params["b2"],
        params["gff"], params["bff"],
        params["g2"], params["be2"],
    ]

    def full_spec(shape):
        nd = len(shape)
        return pl.BlockSpec(shape, lambda b, _nd=nd: (0,) * _nd)

    row_block = pl.BlockSpec((T, C), lambda b: (b, 0))
    in_specs = [row_block] + [full_spec(tuple(w.shape)) for w in weights]

    kernel = functools.partial(encode_block_kernel, n_embd=C)

    # Advisory cost estimate so XLA does not treat the custom call as zero-cost.
    flops = (2 * B * T * C * 3 * C          # fused QKV projection
             + 4 * B * T * C * C            # K^T V  +  Q @ M
             + 2 * B * T * C * C            # output projection
             + 4 * B * T * C * 4 * C)       # FFN (two matmuls)
    weight_bytes = 4 * sum(int(np.prod(w.shape)) for w in weights)
    bytes_accessed = 4 * (4 * B * T * C) + weight_bytes  # x + 3 outputs + params
    cost = pl.CostEstimate(flops=flops, transcendentals=3 * B * T,
                           bytes_accessed=bytes_accessed)

    out_flat, k_flat, v_flat = pl.pallas_call(
        kernel,
        out_shape=(
            jax.ShapeDtypeStruct((B * T, C), jnp.float32),
            jax.ShapeDtypeStruct((B * T, C), jnp.float32),
            jax.ShapeDtypeStruct((B * T, C), jnp.float32),
        ),
        grid_spec=pltpu.PrefetchScalarGridSpec(
            num_scalar_prefetch=0,
            grid=(B,),
            in_specs=in_specs,
            out_specs=[row_block, row_block, row_block],
        ),
        compiler_params=pltpu.CompilerParams(
            dimension_semantics=("parallel",),
            vmem_limit_bytes=32 * 1024 * 1024,
        ),
        cost_estimate=cost,
    )(x_flat, *weights)

    return (out_flat.reshape(B, T, C),
            k_flat.reshape(B, T, C),
            v_flat.reshape(B, T, C))


def make_params(key, n_embd, num_heads):
    """Deterministic synthetic parameters (PyTorch-equivalent shapes, stored
    transposed as (in, out) for the kernel)."""
    C = n_embd
    ks = jax.random.split(key, 12)

    def lin(k, fan_in, fan_out):
        kw, kb = jax.random.split(k)
        w = jax.random.normal(kw, (fan_in, fan_out), jnp.float32) * 0.05
        b = jax.random.normal(kb, (1, fan_out), jnp.float32) * 0.05
        return w, b

    wq, bq = lin(ks[0], C, C)
    wk, bk = lin(ks[1], C, C)
    wv, bv = lin(ks[2], C, C)
    wp, bp = lin(ks[3], C, C)
    w1, b1 = lin(ks[4], C, 4 * C)
    w2, b2 = lin(ks[5], 4 * C, C)

    def ln_params(k):
        kg, kb = jax.random.split(k)
        g = 1.0 + 0.1 * jax.random.normal(kg, (1, C), jnp.float32)
        b = 0.1 * jax.random.normal(kb, (1, C), jnp.float32)
        return g, b

    g1, be1 = ln_params(ks[6])
    gff, bff = ln_params(ks[7])
    g2, be2 = ln_params(ks[8])

    return dict(
        wq=wq, bq=bq, wk=wk, bk=bk, wv=wv, bv=bv,
        wp=wp, bp=bp,
        g1=g1, be1=be1,
        w1=w1, b1=b1, w2=w2, b2=b2,
        gff=gff, bff=bff,
        g2=g2, be2=be2,
    )


def encode_block_ref(x, p, *, num_heads):
    """Pure-JAX reference of the PyTorch forward (original association)."""
    B, T, C = x.shape
    hs = C // num_heads

    def ln(y, g, b):
        mu = jnp.mean(y, axis=-1, keepdims=True)
        var = jnp.mean((y - mu) ** 2, axis=-1, keepdims=True)
        return (y - mu) / jnp.sqrt(var + LN_EPS) * g + b

    Q = x @ p["wq"] + p["bq"]
    K = x @ p["wk"] + p["bk"]
    V = x @ p["wv"] + p["bv"]
    outs = []
    for h in range(num_heads):
        lo, hi = h * hs, (h + 1) * hs
        wei = (Q[..., lo:hi] @ jnp.swapaxes(K[..., lo:hi], -2, -1)) * hs ** -0.5
        outs.append(wei @ V[..., lo:hi])
    att = jnp.concatenate(outs, axis=-1)
    proj = att @ p["wp"] + p["bp"]
    out1 = ln(x + proj, p["g1"], p["be1"])
    ff = jnp.maximum(out1 @ p["w1"] + p["b1"], 0.0) @ p["w2"] + p["b2"]
    ff_ln = ln(out1 + ff, p["gff"], p["bff"])
    out = ln(out1 + ff_ln, p["g2"], p["be2"])
    return out, K, V


if __name__ == "__main__":
    B, T, C, num_heads = 2, 8, 32, 4  # block_size=8, n_embd=32

    key = jax.random.PRNGKey(0)
    kx, kp = jax.random.split(key)
    x = jax.random.normal(kx, (B, T, C), jnp.float32)
    params = make_params(kp, C, num_heads)

    out, K, V = encode_block(x, params, num_heads=num_heads)
    jax.block_until_ready((out, K, V))

    out_r, K_r, V_r = encode_block_ref(x, params, num_heads=num_heads)
    # Tolerance covers the (exact-in-math) f32 reassociation of the softmax-free
    # attention:  (Q K^T * s) V  ->  Q @ (s * K^T V).
    np.testing.assert_allclose(np.asarray(out), np.asarray(out_r), rtol=1e-3, atol=1e-3)
    np.testing.assert_allclose(np.asarray(K), np.asarray(K_r), rtol=1e-3, atol=1e-3)
    np.testing.assert_allclose(np.asarray(V), np.asarray(V_r), rtol=1e-3, atol=1e-3)

    print("KERNEL_OK")
</pallas_src>

<mosaic_0001>
module attributes {stable_mosaic.version = 11 : i64} {
  func.func @encode_block_kernel(%arg0: i32, %arg1: memref<8x32xf32, #tpu.memory_space<vmem>>, %arg2: memref<32x96xf32, #tpu.memory_space<vmem>>, %arg3: memref<1x96xf32, #tpu.memory_space<vmem>>, %arg4: memref<32x32xf32, #tpu.memory_space<vmem>>, %arg5: memref<32x32xf32, #tpu.memory_space<vmem>>, %arg6: memref<1x32xf32, #tpu.memory_space<vmem>>, %arg7: memref<1x32xf32, #tpu.memory_space<vmem>>, %arg8: memref<1x32xf32, #tpu.memory_space<vmem>>, %arg9: memref<32x128xf32, #tpu.memory_space<vmem>>, %arg10: memref<1x128xf32, #tpu.memory_space<vmem>>, %arg11: memref<128x32xf32, #tpu.memory_space<vmem>>, %arg12: memref<1x32xf32, #tpu.memory_space<vmem>>, %arg13: memref<1x32xf32, #tpu.memory_space<vmem>>, %arg14: memref<1x32xf32, #tpu.memory_space<vmem>>, %arg15: memref<1x32xf32, #tpu.memory_space<vmem>>, %arg16: memref<1x32xf32, #tpu.memory_space<vmem>>, %arg17: memref<8x32xf32, #tpu.memory_space<vmem>>, %arg18: memref<8x32xf32, #tpu.memory_space<vmem>>, %arg19: memref<8x32xf32, #tpu.memory_space<vmem>>) attributes {dimension_semantics = [#tpu.dimension_semantics<parallel>], iteration_bounds = array<i64: 2>, scalar_prefetch = 0 : i64, scratch_operands = 0 : i64, tpu.core_type = #tpu.core_type<tc>, window_params = [{transform_indices = @transform_0, window_bounds = array<i64: 8, 32>}, {pipeline_mode = #tpu.pipeline_mode<synchronous>, transform_indices = @transform_1, window_bounds = array<i64: 32, 96>}, {pipeline_mode = #tpu.pipeline_mode<synchronous>, transform_indices = @transform_2, window_bounds = array<i64: 1, 96>}, {pipeline_mode = #tpu.pipeline_mode<synchronous>, transform_indices = @transform_3, window_bounds = array<i64: 32, 32>}, {pipeline_mode = #tpu.pipeline_mode<synchronous>, transform_indices = @transform_4, window_bounds = array<i64: 32, 32>}, {pipeline_mode = #tpu.pipeline_mode<synchronous>, transform_indices = @transform_5, window_bounds = array<i64: 1, 32>}, {pipeline_mode = #tpu.pipeline_mode<synchronous>, transform_indices = @transform_6, window_bounds = array<i64: 1, 32>}, {pipeline_mode = #tpu.pipeline_mode<synchronous>, transform_indices = @transform_7, window_bounds = array<i64: 1, 32>}, {pipeline_mode = #tpu.pipeline_mode<synchronous>, transform_indices = @transform_8, window_bounds = array<i64: 32, 128>}, {pipeline_mode = #tpu.pipeline_mode<synchronous>, transform_indices = @transform_9, window_bounds = array<i64: 1, 128>}, {pipeline_mode = #tpu.pipeline_mode<synchronous>, transform_indices = @transform_10, window_bounds = array<i64: 128, 32>}, {pipeline_mode = #tpu.pipeline_mode<synchronous>, transform_indices = @transform_11, window_bounds = array<i64: 1, 32>}, {pipeline_mode = #tpu.pipeline_mode<synchronous>, transform_indices = @transform_12, window_bounds = array<i64: 1, 32>}, {pipeline_mode = #tpu.pipeline_mode<synchronous>, transform_indices = @transform_13, window_bounds = array<i64: 1, 32>}, {pipeline_mode = #tpu.pipeline_mode<synchronous>, transform_indices = @transform_14, window_bounds = array<i64: 1, 32>}, {pipeline_mode = #tpu.pipeline_mode<synchronous>, transform_indices = @transform_15, window_bounds = array<i64: 1, 32>}, {transform_indices = @transform_16, window_bounds = array<i64: 8, 32>}, {transform_indices = @transform_17, window_bounds = array<i64: 8, 32>}, {transform_indices = @transform_18, window_bounds = array<i64: 8, 32>}]} {
    %c0 = arith.constant 0 : index
    %c0_0 = arith.constant 0 : index
    %0 = vector.load %arg1[%c0, %c0_0] : memref<8x32xf32, #tpu.memory_space<vmem>>, vector<8x32xf32>
    %c0_1 = arith.constant 0 : index
    %c0_2 = arith.constant 0 : index
    %1 = vector.load %arg2[%c0_1, %c0_2] : memref<32x96xf32, #tpu.memory_space<vmem>>, vector<32x96xf32>
    %cst = arith.constant dense<0.000000e+00> : vector<8x96xf32>
    %2 = tpu.matmul %0, %1, %cst {dimension_numbers = #tpu.dot_dimension_numbers<[1], [0], [0], [1], [0, 0, 1, 1], [], []>} : vector<8x32xf32>, vector<32x96xf32>, vector<8x96xf32> -> vector<8x96xf32>
    %c0_3 = arith.constant 0 : index
    %c0_4 = arith.constant 0 : index
    %3 = vector.load %arg3[%c0_3, %c0_4] : memref<1x96xf32, #tpu.memory_space<vmem>>, vector<1x96xf32>
    %4 = vector.broadcast %3 : vector<1x96xf32> to vector<8x96xf32>
    %5 = arith.addf %2, %4 : vector<8x96xf32>
    %6 = vector.extract_strided_slice %5 {offsets = [0, 0], sizes = [8, 32], strides = [1, 1]} : vector<8x96xf32> to vector<8x32xf32>
    %7 = vector.extract_strided_slice %5 {offsets = [0, 32], sizes = [8, 32], strides = [1, 1]} : vector<8x96xf32> to vector<8x32xf32>
    %8 = vector.extract_strided_slice %5 {offsets = [0, 64], sizes = [8, 32], strides = [1, 1]} : vector<8x96xf32> to vector<8x32xf32>
    %cst_5 = arith.constant dense<0.000000e+00> : vector<32x32xf32>
    %9 = tpu.matmul %7, %8, %cst_5 {dimension_numbers = #tpu.dot_dimension_numbers<[0], [0], [1], [1], [0, 1, 1, 1], [], []>} : vector<8x32xf32>, vector<8x32xf32>, vector<32x32xf32> -> vector<32x32xf32>
    %c0_6 = arith.constant 0 : index
    %c0_7 = arith.constant 0 : index
    %10 = vector.load %arg4[%c0_6, %c0_7] : memref<32x32xf32, #tpu.memory_space<vmem>>, vector<32x32xf32>
    %11 = arith.mulf %9, %10 : vector<32x32xf32>
    %cst_8 = arith.constant dense<0.000000e+00> : vector<8x32xf32>
    %12 = tpu.matmul %6, %11, %cst_8 {dimension_numbers = #tpu.dot_dimension_numbers<[1], [0], [0], [1], [0, 0, 1, 1], [], []>} : vector<8x32xf32>, vector<32x32xf32>, vector<8x32xf32> -> vector<8x32xf32>
    %c0_9 = arith.constant 0 : index
    %c0_10 = arith.constant 0 : index
    %13 = vector.load %arg5[%c0_9, %c0_10] : memref<32x32xf32, #tpu.memory_space<vmem>>, vector<32x32xf32>
    %cst_11 = arith.constant dense<0.000000e+00> : vector<8x32xf32>
    %14 = tpu.matmul %12, %13, %cst_11 {dimension_numbers = #tpu.dot_dimension_numbers<[1], [0], [0], [1], [0, 0, 1, 1], [], []>} : vector<8x32xf32>, vector<32x32xf32>, vector<8x32xf32> -> vector<8x32xf32>
    %c0_12 = arith.constant 0 : index
    %c0_13 = arith.constant 0 : index
    %15 = vector.load %arg6[%c0_12, %c0_13] : memref<1x32xf32, #tpu.memory_space<vmem>>, vector<1x32xf32>
    %16 = vector.broadcast %15 : vector<1x32xf32> to vector<8x32xf32>
    %17 = arith.addf %14, %16 : vector<8x32xf32>
    %18 = arith.addf %0, %17 : vector<8x32xf32>
    %c0_14 = arith.constant 0 : index
    %c0_15 = arith.constant 0 : index
    %19 = vector.load %arg7[%c0_14, %c0_15] : memref<1x32xf32, #tpu.memory_space<vmem>>, vector<1x32xf32>
    %c0_16 = arith.constant 0 : index
    %c0_17 = arith.constant 0 : index
    %20 = vector.load %arg8[%c0_16, %c0_17] : memref<1x32xf32, #tpu.memory_space<vmem>>, vector<1x32xf32>
    %cst_18 = arith.constant dense<0.000000e+00> : vector<8xf32>
    %21 = vector.multi_reduction <add>, %18, %cst_18 [1] : vector<8x32xf32> to vector<8xf32>
    %22 = vector.shape_cast %21 : vector<8xf32> to vector<8x1xf32>
    %cst_19 = arith.constant 3.200000e+01 : f32
    %23 = vector.broadcast %cst_19 : f32 to vector<8x1xf32>
    %24 = arith.divf %22, %23 : vector<8x1xf32>
    %25 = vector.broadcast %24 : vector<8x1xf32> to vector<8x32xf32>
    %26 = arith.subf %18, %25 : vector<8x32xf32>
    %27 = arith.mulf %26, %26 : vector<8x32xf32>
    %cst_20 = arith.constant dense<0.000000e+00> : vector<8xf32>
    %28 = vector.multi_reduction <add>, %27, %cst_20 [1] : vector<8x32xf32> to vector<8xf32>
    %29 = vector.shape_cast %28 : vector<8xf32> to vector<8x1xf32>
    %cst_21 = arith.constant 3.200000e+01 : f32
    %30 = vector.broadcast %cst_21 : f32 to vector<8x1xf32>
    %31 = arith.divf %29, %30 : vector<8x1xf32>
    %32 = vector.broadcast %24 : vector<8x1xf32> to vector<8x32xf32>
    %33 = arith.subf %18, %32 : vector<8x32xf32>
    %cst_22 = arith.constant 9.99999974E-6 : f32
    %34 = vector.broadcast %cst_22 : f32 to vector<8x1xf32>
    %35 = arith.addf %31, %34 : vector<8x1xf32>
    %36 = math.rsqrt %35 : vector<8x1xf32>
    %37 = vector.broadcast %36 : vector<8x1xf32> to vector<8x32xf32>
    %38 = arith.mulf %33, %37 : vector<8x32xf32>
    %39 = vector.broadcast %19 : vector<1x32xf32> to vector<8x32xf32>
    %40 = arith.mulf %38, %39 : vector<8x32xf32>
    %41 = vector.broadcast %20 : vector<1x32xf32> to vector<8x32xf32>
    %42 = arith.addf %40, %41 : vector<8x32xf32>
    %c0_23 = arith.constant 0 : index
    %c0_24 = arith.constant 0 : index
    %43 = vector.load %arg9[%c0_23, %c0_24] : memref<32x128xf32, #tpu.memory_space<vmem>>, vector<32x128xf32>
    %cst_25 = arith.constant dense<0.000000e+00> : vector<8x128xf32>
    %44 = tpu.matmul %42, %43, %cst_25 {dimension_numbers = #tpu.dot_dimension_numbers<[1], [0], [0], [1], [0, 0, 1, 1], [], []>} : vector<8x32xf32>, vector<32x128xf32>, vector<8x128xf32> -> vector<8x128xf32>
    %c0_26 = arith.constant 0 : index
    %c0_27 = arith.constant 0 : index
    %45 = vector.load %arg10[%c0_26, %c0_27] : memref<1x128xf32, #tpu.memory_space<vmem>>, vector<1x128xf32>
    %46 = vector.broadcast %45 : vector<1x128xf32> to vector<8x128xf32>
    %47 = arith.addf %44, %46 : vector<8x128xf32>
    %cst_28 = arith.constant 0.000000e+00 : f32
    %48 = vector.broadcast %cst_28 : f32 to vector<8x128xf32>
    %49 = arith.maximumf %47, %48 : vector<8x128xf32>
    %c0_29 = arith.constant 0 : index
    %c0_30 = arith.constant 0 : index
    %50 = vector.load %arg11[%c0_29, %c0_30] : memref<128x32xf32, #tpu.memory_space<vmem>>, vector<128x32xf32>
    %cst_31 = arith.constant dense<0.000000e+00> : vector<8x32xf32>
    %51 = tpu.matmul %49, %50, %cst_31 {dimension_numbers = #tpu.dot_dimension_numbers<[1], [0], [0], [1], [0, 0, 1, 1], [], []>} : vector<8x128xf32>, vector<128x32xf32>, vector<8x32xf32> -> vector<8x32xf32>
    %c0_32 = arith.constant 0 : index
    %c0_33 = arith.constant 0 : index
    %52 = vector.load %arg12[%c0_32, %c0_33] : memref<1x32xf32, #tpu.memory_space<vmem>>, vector<1x32xf32>
    %53 = vector.broadcast %52 : vector<1x32xf32> to vector<8x32xf32>
    %54 = arith.addf %51, %53 : vector<8x32xf32>
    %55 = arith.addf %42, %54 : vector<8x32xf32>
    %c0_34 = arith.constant 0 : index
    %c0_35 = arith.constant 0 : index
    %56 = vector.load %arg13[%c0_34, %c0_35] : memref<1x32xf32, #tpu.memory_space<vmem>>, vector<1x32xf32>
    %c0_36 = arith.constant 0 : index
    %c0_37 = arith.constant 0 : index
    %57 = vector.load %arg14[%c0_36, %c0_37] : memref<1x32xf32, #tpu.memory_space<vmem>>, vector<1x32xf32>
    %cst_38 = arith.constant dense<0.000000e+00> : vector<8xf32>
    %58 = vector.multi_reduction <add>, %55, %cst_38 [1] : vector<8x32xf32> to vector<8xf32>
    %59 = vector.shape_cast %58 : vector<8xf32> to vector<8x1xf32>
    %cst_39 = arith.constant 3.200000e+01 : f32
    %60 = vector.broadcast %cst_39 : f32 to vector<8x1xf32>
    %61 = arith.divf %59, %60 : vector<8x1xf32>
    %62 = vector.broadcast %61 : vector<8x1xf32> to vector<8x32xf32>
    %63 = arith.subf %55, %62 : vector<8x32xf32>
    %64 = arith.mulf %63, %63 : vector<8x32xf32>
    %cst_40 = arith.constant dense<0.000000e+00> : vector<8xf32>
    %65 = vector.multi_reduction <add>, %64, %cst_40 [1] : vector<8x32xf32> to vector<8xf32>
    %66 = vector.shape_cast %65 : vector<8xf32> to vector<8x1xf32>
    %cst_41 = arith.constant 3.200000e+01 : f32
    %67 = vector.broadcast %cst_41 : f32 to vector<8x1xf32>
    %68 = arith.divf %66, %67 : vector<8x1xf32>
    %69 = vector.broadcast %61 : vector<8x1xf32> to vector<8x32xf32>
    %70 = arith.subf %55, %69 : vector<8x32xf32>
    %cst_42 = arith.constant 9.99999974E-6 : f32
    %71 = vector.broadcast %cst_42 : f32 to vector<8x1xf32>
    %72 = arith.addf %68, %71 : vector<8x1xf32>
    %73 = math.rsqrt %72 : vector<8x1xf32>
    %74 = vector.broadcast %73 : vector<8x1xf32> to vector<8x32xf32>
    %75 = arith.mulf %70, %74 : vector<8x32xf32>
    %76 = vector.broadcast %56 : vector<1x32xf32> to vector<8x32xf32>
    %77 = arith.mulf %75, %76 : vector<8x32xf32>
    %78 = vector.broadcast %57 : vector<1x32xf32> to vector<8x32xf32>
    %79 = arith.addf %77, %78 : vector<8x32xf32>
    %80 = arith.addf %42, %79 : vector<8x32xf32>
    %c0_43 = arith.constant 0 : index
    %c0_44 = arith.constant 0 : index
    %81 = vector.load %arg15[%c0_43, %c0_44] : memref<1x32xf32, #tpu.memory_space<vmem>>, vector<1x32xf32>
    %c0_45 = arith.constant 0 : index
    %c0_46 = arith.constant 0 : index
    %82 = vector.load %arg16[%c0_45, %c0_46] : memref<1x32xf32, #tpu.memory_space<vmem>>, vector<1x32xf32>
    %cst_47 = arith.constant dense<0.000000e+00> : vector<8xf32>
    %83 = vector.multi_reduction <add>, %80, %cst_47 [1] : vector<8x32xf32> to vector<8xf32>
    %84 = vector.shape_cast %83 : vector<8xf32> to vector<8x1xf32>
    %cst_48 = arith.constant 3.200000e+01 : f32
    %85 = vector.broadcast %cst_48 : f32 to vector<8x1xf32>
    %86 = arith.divf %84, %85 : vector<8x1xf32>
    %87 = vector.broadcast %86 : vector<8x1xf32> to vector<8x32xf32>
    %88 = arith.subf %80, %87 : vector<8x32xf32>
    %89 = arith.mulf %88, %88 : vector<8x32xf32>
    %cst_49 = arith.constant dense<0.000000e+00> : vector<8xf32>
    %90 = vector.multi_reduction <add>, %89, %cst_49 [1] : vector<8x32xf32> to vector<8xf32>
    %91 = vector.shape_cast %90 : vector<8xf32> to vector<8x1xf32>
    %cst_50 = arith.constant 3.200000e+01 : f32
    %92 = vector.broadcast %cst_50 : f32 to vector<8x1xf32>
    %93 = arith.divf %91, %92 : vector<8x1xf32>
    %94 = vector.broadcast %86 : vector<8x1xf32> to vector<8x32xf32>
    %95 = arith.subf %80, %94 : vector<8x32xf32>
    %cst_51 = arith.constant 9.99999974E-6 : f32
    %96 = vector.broadcast %cst_51 : f32 to vector<8x1xf32>
    %97 = arith.addf %93, %96 : vector<8x1xf32>
    %98 = math.rsqrt %97 : vector<8x1xf32>
    %99 = vector.broadcast %98 : vector<8x1xf32> to vector<8x32xf32>
    %100 = arith.mulf %95, %99 : vector<8x32xf32>
    %101 = vector.broadcast %81 : vector<1x32xf32> to vector<8x32xf32>
    %102 = arith.mulf %100, %101 : vector<8x32xf32>
    %103 = vector.broadcast %82 : vector<1x32xf32> to vector<8x32xf32>
    %104 = arith.addf %102, %103 : vector<8x32xf32>
    %c0_52 = arith.constant 0 : index
    %c0_53 = arith.constant 0 : index
    %105 = vector.load %arg17[%c0_52, %c0_53] : memref<8x32xf32, #tpu.memory_space<vmem>>, vector<8x32xf32>
    tpu.vector_store %arg17[%c0_52, %c0_53], %104 {strides = array<i32>} : memref<8x32xf32, #tpu.memory_space<vmem>>, vector<8x32xf32>,
    %c0_54 = arith.constant 0 : index
    %c0_55 = arith.constant 0 : index
    %106 = vector.load %arg18[%c0_54, %c0_55] : memref<8x32xf32, #tpu.memory_space<vmem>>, vector<8x32xf32>
    tpu.vector_store %arg18[%c0_54, %c0_55], %7 {strides = array<i32>} : memref<8x32xf32, #tpu.memory_space<vmem>>, vector<8x32xf32>,
    %c0_56 = arith.constant 0 : index
    %c0_57 = arith.constant 0 : index
    %107 = vector.load %arg19[%c0_56, %c0_57] : memref<8x32xf32, #tpu.memory_space<vmem>>, vector<8x32xf32>
    tpu.vector_store %arg19[%c0_56, %c0_57], %8 {strides = array<i32>} : memref<8x32xf32, #tpu.memory_space<vmem>>, vector<8x32xf32>,
    return
  }
  func.func @transform_0(%arg0: i32) -> (i32, i32) {
    %c0_i32 = arith.constant 0 : i32
    %c0_i32_0 = arith.constant 0 : i32
    return %arg0, %c0_i32 : i32, i32
  }
  func.func @transform_1(%arg0: i32) -> (i32, i32) {
    %c0_i32 = arith.constant 0 : i32
    %c0_i32_0 = arith.constant 0 : i32
    %c0_i32_1 = arith.constant 0 : i32
    return %c0_i32, %c0_i32_0 : i32, i32
  }
  func.func @transform_2(%arg0: i32) -> (i32, i32) {
    %c0_i32 = arith.constant 0 : i32
    %c0_i32_0 = arith.constant 0 : i32
    %c0_i32_1 = arith.constant 0 : i32
    return %c0_i32, %c0_i32_0 : i32, i32
  }
  func.func @transform_3(%arg0: i32) -> (i32, i32) {
    %c0_i32 = arith.constant 0 : i32
    %c0_i32_0 = arith.constant 0 : i32
    %c0_i32_1 = arith.constant 0 : i32
    return %c0_i32, %c0_i32_0 : i32, i32
  }
  func.func @transform_4(%arg0: i32) -> (i32, i32) {
    %c0_i32 = arith.constant 0 : i32
    %c0_i32_0 = arith.constant 0 : i32
    %c0_i32_1 = arith.constant 0 : i32
    return %c0_i32, %c0_i32_0 : i32, i32
  }
  func.func @transform_5(%arg0: i32) -> (i32, i32) {
    %c0_i32 = arith.constant 0 : i32
    %c0_i32_0 = arith.constant 0 : i32
    %c0_i32_1 = arith.constant 0 : i32
    return %c0_i32, %c0_i32_0 : i32, i32
  }
  func.func @transform_6(%arg0: i32) -> (i32, i32) {
    %c0_i32 = arith.constant 0 : i32
    %c0_i32_0 = arith.constant 0 : i32
    %c0_i32_1 = arith.constant 0 : i32
    return %c0_i32, %c0_i32_0 : i32, i32
  }
  func.func @transform_7(%arg0: i32) -> (i32, i32) {
    %c0_i32 = arith.constant 0 : i32
    %c0_i32_0 = arith.constant 0 : i32
    %c0_i32_1 = arith.constant 0 : i32
    return %c0_i32, %c0_i32_0 : i32, i32
  }
  func.func @transform_8(%arg0: i32) -> (i32, i32) {
    %c0_i32 = arith.constant 0 : i32
    %c0_i32_0 = arith.constant 0 : i32
    %c0_i32_1 = arith.constant 0 : i32
    return %c0_i32, %c0_i32_0 : i32, i32
  }
  func.func @transform_9(%arg0: i32) -> (i32, i32) {
    %c0_i32 = arith.constant 0 : i32
    %c0_i32_0 = arith.constant 0 : i32
    %c0_i32_1 = arith.constant 0 : i32
    return %c0_i32, %c0_i32_0 : i32, i32
  }
  func.func @transform_10(%arg0: i32) -> (i32, i32) {
    %c0_i32 = arith.constant 0 : i32
    %c0_i32_0 = arith.constant 0 : i32
    %c0_i32_1 = arith.constant 0 : i32
    return %c0_i32, %c0_i32_0 : i32, i32
  }
  func.func @transform_11(%arg0: i32) -> (i32, i32) {
    %c0_i32 = arith.constant 0 : i32
    %c0_i32_0 = arith.constant 0 : i32
    %c0_i32_1 = arith.constant 0 : i32
    return %c0_i32, %c0_i32_0 : i32, i32
  }
  func.func @transform_12(%arg0: i32) -> (i32, i32) {
    %c0_i32 = arith.constant 0 : i32
    %c0_i32_0 = arith.constant 0 : i32
    %c0_i32_1 = arith.constant 0 : i32
    return %c0_i32, %c0_i32_0 : i32, i32
  }
  func.func @transform_13(%arg0: i32) -> (i32, i32) {
    %c0_i32 = arith.constant 0 : i32
    %c0_i32_0 = arith.constant 0 : i32
    %c0_i32_1 = arith.constant 0 : i32
    return %c0_i32, %c0_i32_0 : i32, i32
  }
  func.func @transform_14(%arg0: i32) -> (i32, i32) {
    %c0_i32 = arith.constant 0 : i32
    %c0_i32_0 = arith.constant 0 : i32
    %c0_i32_1 = arith.constant 0 : i32
    return %c0_i32, %c0_i32_0 : i32, i32
  }
  func.func @transform_15(%arg0: i32) -> (i32, i32) {
    %c0_i32 = arith.constant 0 : i32
    %c0_i32_0 = arith.constant 0 : i32
    %c0_i32_1 = arith.constant 0 : i32
    return %c0_i32, %c0_i32_0 : i32, i32
  }
  func.func @transform_16(%arg0: i32) -> (i32, i32) {
    %c0_i32 = arith.constant 0 : i32
    %c0_i32_0 = arith.constant 0 : i32
    return %arg0, %c0_i32 : i32, i32
  }
  func.func @transform_17(%arg0: i32) -> (i32, i32) {
    %c0_i32 = arith.constant 0 : i32
    %c0_i32_0 = arith.constant 0 : i32
    return %arg0, %c0_i32 : i32, i32
  }
  func.func @transform_18(%arg0: i32) -> (i32, i32) {
    %c0_i32 = arith.constant 0 : i32
    %c0_i32_0 = arith.constant 0 : i32
    return %arg0, %c0_i32 : i32, i32
  }
}

</mosaic_0001>

<llo_original>
// kernel: tpu_custom_call.1
$region0: #{tpu_custom_call.1}
  #allocation0 [shape = 'u32[]', space=smem, size = 0x4, offset = 0x4, fixed_abs, tag = 'smem constant byte address 0x4 - core index']
  #allocation1 [shape = 'u32[144,128]{1,0:T(1,128)}', space=vmem, size = 0x12000, scoped, tag = 'internal scratch']
  %s0 = inlined_call_operand.vmem [shape: f32[16,32], index: 0, kind: input, shape index: {}]
  %s1 = inlined_call_operand.vmem [shape: f32[32,96], index: 1, kind: input, shape index: {}]
  %s2 = inlined_call_operand.vmem [shape: f32[1,96], index: 2, kind: input, shape index: {}]
  %s3 = inlined_call_operand.vmem [shape: f32[32,32], index: 3, kind: input, shape index: {}]
  %s4 = inlined_call_operand.vmem [shape: f32[32,32], index: 4, kind: input, shape index: {}]
  %s5 = inlined_call_operand.vmem [shape: f32[1,32], index: 5, kind: input, shape index: {}]
  %s6 = inlined_call_operand.vmem [shape: f32[1,32], index: 6, kind: input, shape index: {}]
  %s7 = inlined_call_operand.vmem [shape: f32[1,32], index: 7, kind: input, shape index: {}]
  %s8 = inlined_call_operand.vmem [shape: f32[32,128], index: 8, kind: input, shape index: {}]
  %s9 = inlined_call_operand.vmem [shape: f32[1,128], index: 9, kind: input, shape index: {}]
  %s10 = inlined_call_operand.vmem [shape: f32[128,32], index: 10, kind: input, shape index: {}]
  %s11 = inlined_call_operand.vmem [shape: f32[1,32], index: 11, kind: input, shape index: {}]
  %s12 = inlined_call_operand.vmem [shape: f32[1,32], index: 12, kind: input, shape index: {}]
  %s13 = inlined_call_operand.vmem [shape: f32[1,32], index: 13, kind: input, shape index: {}]
  %s14 = inlined_call_operand.vmem [shape: f32[1,32], index: 14, kind: input, shape index: {}]
  %s15 = inlined_call_operand.vmem [shape: f32[1,32], index: 15, kind: input, shape index: {}]
  %s16 = inlined_call_operand.hbm [shape: f32[16,32], index: 16, kind: output, shape index: {0}]
  %s17 = inlined_call_operand.hbm [shape: f32[16,32], index: 17, kind: output, shape index: {1}]
  %s18 = inlined_call_operand.hbm [shape: f32[16,32], index: 18, kind: output, shape index: {2}]
  %19 = xla_tuple %s16, %s17, %s18
  %s20 = sld [smem:[#allocation0]]
  $region113: #{tpu_custom_call.1} parent=0
    _
  %s22 = ssub.s32 1, %s20
  %s23 = scalar_select 0, %s22, %s20
  $region1: #{tpu_custom_call.1} parent=0
    #allocation2 [shape = 'u8[8192]{0}', space=vmem, size = 0x2000, scoped, tag = 'output window, operand 0']
    #allocation3 [shape = 's32[2]{0}', space=sflag, size = 0x8, scoped, tag = 'scoped memory for tpu_custom_call.1']
    #allocation4 [shape = 'u8[8192]{0}', space=vmem, size = 0x2000, scoped, tag = 'output window, operand 1']
    #allocation5 [shape = 's32[2]{0}', space=sflag, size = 0x8, scoped, tag = 'scoped memory for tpu_custom_call.1']
    #allocation6 [shape = 'u8[8192]{0}', space=vmem, size = 0x2000, scoped, tag = 'output window, operand 2']
    %24 = vsyncpa [#allocation3], 0
    %s25 = scalar_lea.sflag [#allocation3], 1
    %26 = vsyncpa %s25, 0
    %27 = vsyncpa [#allocation5], 0
    %s28 = scalar_lea.sflag [#allocation5], 1
    %29 = vsyncpa %s28, 0
    loop: start=0, step=1, limit=4
    $region2: #{tpu_custom_call.1} parent=1 // loop_pre_header
      _
    $region3: #{tpu_custom_call.1} parent=1 // loop_header
      %s31 = sphi 0, %s35
      %p32 = scmp.ge.s32.totalorder %s31, 4
      %s41 = sphi 0, %s43
      %s44 = sphi 0, %s41
      %s45 = sphi 0, %s44
      %s61 = sphi 0, %s45
      %s65 = sphi 0, %s65
      %s67 = sphi 0, %s65
      %s68 = sphi 0, %s67
      %s82 = sphi 0, %s68
      %s86 = sphi 0, %s86
      %s88 = sphi 0, %s86
      %s89 = sphi 0, %s88
      %s103 = sphi 0, %s89
      %s107 = sphi 0, %s107
      %s109 = sphi 0, %s107
      %s110 = sphi 0, %s109
      %s124 = sphi 0, %s110
      %s128 = sphi 0, %s128
      %s130 = sphi 0, %s128
      %s131 = sphi 0, %s130
      %s145 = sphi 0, %s131
      %s149 = sphi 0, %s149
      %s151 = sphi 0, %s149
      %s152 = sphi 0, %s151
      %s166 = sphi 0, %s152
      %s170 = sphi 0, %s170
      %s172 = sphi 0, %s170
      %s173 = sphi 0, %s172
      %s187 = sphi 0, %s173
      %s191 = sphi 0, %s191
      %s193 = sphi 0, %s191
      %s194 = sphi 0, %s193
      %s208 = sphi 0, %s194
      %s212 = sphi 0, %s212
      %s214 = sphi 0, %s212
      %s215 = sphi 0, %s214
      %s229 = sphi 0, %s215
      %s233 = sphi 0, %s233
      %s235 = sphi 0, %s233
      %s236 = sphi 0, %s235
      %s250 = sphi 0, %s236
      %s254 = sphi 0, %s254
      %s256 = sphi 0, %s254
      %s257 = sphi 0, %s256
      %s271 = sphi 0, %s257
      %s275 = sphi 0, %s275
      %s277 = sphi 0, %s275
      %s278 = sphi 0, %s277
      %s292 = sphi 0, %s278
      %s296 = sphi 0, %s296
      %s298 = sphi 0, %s296
      %s299 = sphi 0, %s298
      %s313 = sphi 0, %s299
      %s317 = sphi 0, %s317
      %s319 = sphi 0, %s317
      %s320 = sphi 0, %s319
      %s334 = sphi 0, %s320
      %s338 = sphi 0, %s338
      %s340 = sphi 0, %s338
      %s341 = sphi 0, %s340
      %s355 = sphi 0, %s341
      %s359 = sphi 0, %s359
      %s361 = sphi 0, %s359
      %s362 = sphi 0, %s361
      %s376 = sphi 0, %s362
      %s382 = sphi 0, %s384
      %s385 = sphi 0, %s382
      %s386 = sphi 0, %s385
      %s402 = sphi 0, %s386
      %s408 = sphi 0, %s410
      %s411 = sphi 0, %s408
      %s412 = sphi 0, %s411
      %s428 = sphi 0, %s412
      %s434 = sphi 0, %s436
      %s437 = sphi 0, %s434
      %s438 = sphi 0, %s437
      %s454 = sphi 0, %s438
    $region4: #{tpu_custom_call.1} parent=1 // loop_header_branch
      %34 = sbr.rel (%p32) target = $region8
    $region5: #{tpu_custom_call.1} parent=1 // loop_body
      %s36 = ssub.s32 %s31, 1
      %s37 = ssub.s32 %s31, 2
      %s38 = sadd.s32 %s31, 1
      %s39 = ssub.s32 %s31, %s38
      %p40 = scmp.eq.s32.totalorder %s39, 0
      %s42 = sadd.s32 %s41, 1
      %s43 = scalar_select %p40, %s41, %s42
      %p46 = pneg %p40
      %p47 = scmp.eq.s32.totalorder %s31, 1
      %p48 = por %p46, %p47
      %p49 = scmp.ne.s32.totalorder %s41, %s44
      %p50 = scmp.eq.s32.totalorder %s31, 0
      %p51 = por %p49, %p50
      %p52 = scmp.ne.s32.totalorder %s41, %s44
      %p53 = scmp.eq.s32.totalorder %s36, 1
      %p54 = por %p52, %p53
      %p55 = scmp.ne.s32.totalorder %s44, %s45
      %p56 = scmp.eq.s32.totalorder %s36, 0
      %p57 = por %p55, %p56
      %p58 = scmp.ne.s32.totalorder %s44, %s45
      %p59 = scmp.eq.s32.totalorder %s37, 1
      %p60 = por %p58, %p59
      %p62 = scmp.ne.s32.totalorder %s45, %s61
      %p63 = scmp.eq.s32.totalorder %s37, 0
      %p64 = por %p62, %p63
      %s66 = sadd.s32 %s65, 1
      %p69 = scmp.eq.s32.totalorder %s31, 1
      %p70 = scmp.ne.s32.totalorder %s65, %s67
      %p71 = scmp.eq.s32.totalorder %s31, 0
      %p72 = por %p70, %p71
      %p73 = scmp.ne.s32.totalorder %s65, %s67
      %p74 = scmp.eq.s32.totalorder %s36, 1
      %p75 = por %p73, %p74
      %p76 = scmp.ne.s32.totalorder %s67, %s68
      %p77 = scmp.eq.s32.totalorder %s36, 0
      %p78 = por %p76, %p77
      %p79 = scmp.ne.s32.totalorder %s67, %s68
      %p80 = scmp.eq.s32.totalorder %s37, 1
      %p81 = por %p79, %p80
      %p83 = scmp.ne.s32.totalorder %s68, %s82
      %p84 = scmp.eq.s32.totalorder %s37, 0
      %p85 = por %p83, %p84
      %s87 = sadd.s32 %s86, 1
      %p90 = scmp.eq.s32.totalorder %s31, 1
      %p91 = scmp.ne.s32.totalorder %s86, %s88
      %p92 = scmp.eq.s32.totalorder %s31, 0
      %p93 = por %p91, %p92
      %p94 = scmp.ne.s32.totalorder %s86, %s88
      %p95 = scmp.eq.s32.totalorder %s36, 1
      %p96 = por %p94, %p95
      %p97 = scmp.ne.s32.totalorder %s88, %s89
      %p98 = scmp.eq.s32.totalorder %s36, 0
      %p99 = por %p97, %p98
      %p100 = scmp.ne.s32.totalorder %s88, %s89
      %p101 = scmp.eq.s32.totalorder %s37, 1
      %p102 = por %p100, %p101
      %p104 = scmp.ne.s32.totalorder %s89, %s103
      %p105 = scmp.eq.s32.totalorder %s37, 0
      %p106 = por %p104, %p105
      %s108 = sadd.s32 %s107, 1
      %p111 = scmp.eq.s32.totalorder %s31, 1
      %p112 = scmp.ne.s32.totalorder %s107, %s109
      %p113 = scmp.eq.s32.totalorder %s31, 0
      %p114 = por %p112, %p113
      %p115 = scmp.ne.s32.totalorder %s107, %s109
      %p116 = scmp.eq.s32.totalorder %s36, 1
      %p117 = por %p115, %p116
      %p118 = scmp.ne.s32.totalorder %s109, %s110
      %p119 = scmp.eq.s32.totalorder %s36, 0
      %p120 = por %p118, %p119
      %p121 = scmp.ne.s32.totalorder %s109, %s110
      %p122 = scmp.eq.s32.totalorder %s37, 1
      %p123 = por %p121, %p122
      %p125 = scmp.ne.s32.totalorder %s110, %s124
      %p126 = scmp.eq.s32.totalorder %s37, 0
      %p127 = por %p125, %p126
      %s129 = sadd.s32 %s128, 1
      %p132 = scmp.eq.s32.totalorder %s31, 1
      %p133 = scmp.ne.s32.totalorder %s128, %s130
      %p134 = scmp.eq.s32.totalorder %s31, 0
      %p135 = por %p133, %p134
      %p136 = scmp.ne.s32.totalorder %s128, %s130
      %p137 = scmp.eq.s32.totalorder %s36, 1
      %p138 = por %p136, %p137
      %p139 = scmp.ne.s32.totalorder %s130, %s131
      %p140 = scmp.eq.s32.totalorder %s36, 0
      %p141 = por %p139, %p140
      %p142 = scmp.ne.s32.totalorder %s130, %s131
      %p143 = scmp.eq.s32.totalorder %s37, 1
      %p144 = por %p142, %p143
      %p146 = scmp.ne.s32.totalorder %s131, %s145
      %p147 = scmp.eq.s32.totalorder %s37, 0
      %p148 = por %p146, %p147
      %s150 = sadd.s32 %s149, 1
      %p153 = scmp.eq.s32.totalorder %s31, 1
      %p154 = scmp.ne.s32.totalorder %s149, %s151
      %p155 = scmp.eq.s32.totalorder %s31, 0
      %p156 = por %p154, %p155
      %p157 = scmp.ne.s32.totalorder %s149, %s151
      %p158 = scmp.eq.s32.totalorder %s36, 1
      %p159 = por %p157, %p158
      %p160 = scmp.ne.s32.totalorder %s151, %s152
      %p161 = scmp.eq.s32.totalorder %s36, 0
      %p162 = por %p160, %p161
      %p163 = scmp.ne.s32.totalorder %s151, %s152
      %p164 = scmp.eq.s32.totalorder %s37, 1
      %p165 = por %p163, %p164
      %p167 = scmp.ne.s32.totalorder %s152, %s166
      %p168 = scmp.eq.s32.totalorder %s37, 0
      %p169 = por %p167, %p168
      %s171 = sadd.s32 %s170, 1
      %p174 = scmp.eq.s32.totalorder %s31, 1
      %p175 = scmp.ne.s32.totalorder %s170, %s172
      %p176 = scmp.eq.s32.totalorder %s31, 0
      %p177 = por %p175, %p176
      %p178 = scmp.ne.s32.totalorder %s170, %s172
      %p179 = scmp.eq.s32.totalorder %s36, 1
      %p180 = por %p178, %p179
      %p181 = scmp.ne.s32.totalorder %s172, %s173
      %p182 = scmp.eq.s32.totalorder %s36, 0
      %p183 = por %p181, %p182
      %p184 = scmp.ne.s32.totalorder %s172, %s173
      %p185 = scmp.eq.s32.totalorder %s37, 1
      %p186 = por %p184, %p185
      %p188 = scmp.ne.s32.totalorder %s173, %s187
      %p189 = scmp.eq.s32.totalorder %s37, 0
      %p190 = por %p188, %p189
      %s192 = sadd.s32 %s191, 1
      %p195 = scmp.eq.s32.totalorder %s31, 1
      %p196 = scmp.ne.s32.totalorder %s191, %s193
      %p197 = scmp.eq.s32.totalorder %s31, 0
      %p198 = por %p196, %p197
      %p199 = scmp.ne.s32.totalorder %s191, %s193
      %p200 = scmp.eq.s32.totalorder %s36, 1
      %p201 = por %p199, %p200
      %p202 = scmp.ne.s32.totalorder %s193, %s194
      %p203 = scmp.eq.s32.totalorder %s36, 0
      %p204 = por %p202, %p203
      %p205 = scmp.ne.s32.totalorder %s193, %s194
      %p206 = scmp.eq.s32.totalorder %s37, 1
      %p207 = por %p205, %p206
      %p209 = scmp.ne.s32.totalorder %s194, %s208
      %p210 = scmp.eq.s32.totalorder %s37, 0
      %p211 = por %p209, %p210
      %s213 = sadd.s32 %s212, 1
      %p216 = scmp.eq.s32.totalorder %s31, 1
      %p217 = scmp.ne.s32.totalorder %s212, %s214
      %p218 = scmp.eq.s32.totalorder %s31, 0
      %p219 = por %p217, %p218
      %p220 = scmp.ne.s32.totalorder %s212, %s214
      %p221 = scmp.eq.s32.totalorder %s36, 1
      %p222 = por %p220, %p221
      %p223 = scmp.ne.s32.totalorder %s214, %s215
      %p224 = scmp.eq.s32.totalorder %s36, 0
      %p225 = por %p223, %p224
      %p226 = scmp.ne.s32.totalorder %s214, %s215
      %p227 = scmp.eq.s32.totalorder %s37, 1
      %p228 = por %p226, %p227
      %p230 = scmp.ne.s32.totalorder %s215, %s229
      %p231 = scmp.eq.s32.totalorder %s37, 0
      %p232 = por %p230, %p231
      %s234 = sadd.s32 %s233, 1
      %p237 = scmp.eq.s32.totalorder %s31, 1
      %p238 = scmp.ne.s32.totalorder %s233, %s235
      %p239 = scmp.eq.s32.totalorder %s31, 0
      %p240 = por %p238, %p239
      %p241 = scmp.ne.s32.totalorder %s233, %s235
      %p242 = scmp.eq.s32.totalorder %s36, 1
      %p243 = por %p241, %p242
      %p244 = scmp.ne.s32.totalorder %s235, %s236
      %p245 = scmp.eq.s32.totalorder %s36, 0
      %p246 = por %p244, %p245
      %p247 = scmp.ne.s32.totalorder %s235, %s236
      %p248 = scmp.eq.s32.totalorder %s37, 1
      %p249 = por %p247, %p248
      %p251 = scmp.ne.s32.totalorder %s236, %s250
      %p252 = scmp.eq.s32.totalorder %s37, 0
      %p253 = por %p251, %p252
      %s255 = sadd.s32 %s254, 1
      %p258 = scmp.eq.s32.totalorder %s31, 1
      %p259 = scmp.ne.s32.totalorder %s254, %s256
      %p260 = scmp.eq.s32.totalorder %s31, 0
      %p261 = por %p259, %p260
      %p262 = scmp.ne.s32.totalorder %s254, %s256
      %p263 = scmp.eq.s32.totalorder %s36, 1
      %p264 = por %p262, %p263
      %p265 = scmp.ne.s32.totalorder %s256, %s257
      %p266 = scmp.eq.s32.totalorder %s36, 0
      %p267 = por %p265, %p266
      %p268 = scmp.ne.s32.totalorder %s256, %s257
      %p269 = scmp.eq.s32.totalorder %s37, 1
      %p270 = por %p268, %p269
      %p272 = scmp.ne.s32.totalorder %s257, %s271
      %p273 = scmp.eq.s32.totalorder %s37, 0
      %p274 = por %p272, %p273
      %s276 = sadd.s32 %s275, 1
      %p279 = scmp.eq.s32.totalorder %s31, 1
      %p280 = scmp.ne.s32.totalorder %s275, %s277
      %p281 = scmp.eq.s32.totalorder %s31, 0
      %p282 = por %p280, %p281
      %p283 = scmp.ne.s32.totalorder %s275, %s277
      %p284 = scmp.eq.s32.totalorder %s36, 1
      %p285 = por %p283, %p284
      %p286 = scmp.ne.s32.totalorder %s277, %s278
      %p287 = scmp.eq.s32.totalorder %s36, 0
      %p288 = por %p286, %p287
      %p289 = scmp.ne.s32.totalorder %s277, %s278
      %p290 = scmp.eq.s32.totalorder %s37, 1
      %p291 = por %p289, %p290
      %p293 = scmp.ne.s32.totalorder %s278, %s292
      %p294 = scmp.eq.s32.totalorder %s37, 0
      %p295 = por %p293, %p294
      %s297 = sadd.s32 %s296, 1
      %p300 = scmp.eq.s32.totalorder %s31, 1
      %p301 = scmp.ne.s32.totalorder %s296, %s298
      %p302 = scmp.eq.s32.totalorder %s31, 0
      %p303 = por %p301, %p302
      %p304 = scmp.ne.s32.totalorder %s296, %s298
      %p305 = scmp.eq.s32.totalorder %s36, 1
      %p306 = por %p304, %p305
      %p307 = scmp.ne.s32.totalorder %s298, %s299
      %p308 = scmp.eq.s32.totalorder %s36, 0
      %p309 = por %p307, %p308
      %p310 = scmp.ne.s32.totalorder %s298, %s299
      %p311 = scmp.eq.s32.totalorder %s37, 1
      %p312 = por %p310, %p311
      %p314 = scmp.ne.s32.totalorder %s299, %s313
      %p315 = scmp.eq.s32.totalorder %s37, 0
      %p316 = por %p314, %p315
      %s318 = sadd.s32 %s317, 1
      %p321 = scmp.eq.s32.totalorder %s31, 1
      %p322 = scmp.ne.s32.totalorder %s317, %s319
      %p323 = scmp.eq.s32.totalorder %s31, 0
      %p324 = por %p322, %p323
      %p325 = scmp.ne.s32.totalorder %s317, %s319
      %p326 = scmp.eq.s32.totalorder %s36, 1
      %p327 = por %p325, %p326
      %p328 = scmp.ne.s32.totalorder %s319, %s320
      %p329 = scmp.eq.s32.totalorder %s36, 0
      %p330 = por %p328, %p329
      %p331 = scmp.ne.s32.totalorder %s319, %s320
      %p332 = scmp.eq.s32.totalorder %s37, 1
      %p333 = por %p331, %p332
      %p335 = scmp.ne.s32.totalorder %s320, %s334
      %p336 = scmp.eq.s32.totalorder %s37, 0
      %p337 = por %p335, %p336
      %s339 = sadd.s32 %s338, 1
      %p342 = scmp.eq.s32.totalorder %s31, 1
      %p343 = scmp.ne.s32.totalorder %s338, %s340
      %p344 = scmp.eq.s32.totalorder %s31, 0
      %p345 = por %p343, %p344
      %p346 = scmp.ne.s32.totalorder %s338, %s340
      %p347 = scmp.eq.s32.totalorder %s36, 1
      %p348 = por %p346, %p347
      %p349 = scmp.ne.s32.totalorder %s340, %s341
      %p350 = scmp.eq.s32.totalorder %s36, 0
      %p351 = por %p349, %p350
      %p352 = scmp.ne.s32.totalorder %s340, %s341
      %p353 = scmp.eq.s32.totalorder %s37, 1
      %p354 = por %p352, %p353
      %p356 = scmp.ne.s32.totalorder %s341, %s355
      %p357 = scmp.eq.s32.totalorder %s37, 0
      %p358 = por %p356, %p357
      %s360 = sadd.s32 %s359, 1
      %p363 = scmp.eq.s32.totalorder %s31, 1
      %p364 = scmp.ne.s32.totalorder %s359, %s361
      %p365 = scmp.eq.s32.totalorder %s31, 0
      %p366 = por %p364, %p365
      %p367 = scmp.ne.s32.totalorder %s359, %s361
      %p368 = scmp.eq.s32.totalorder %s36, 1
      %p369 = por %p367, %p368
      %p370 = scmp.ne.s32.totalorder %s361, %s362
      %p371 = scmp.eq.s32.totalorder %s36, 0
      %p372 = por %p370, %p371
      %p373 = scmp.ne.s32.totalorder %s361, %s362
      %p374 = scmp.eq.s32.totalorder %s37, 1
      %p375 = por %p373, %p374
      %p377 = scmp.ne.s32.totalorder %s362, %s376
      %p378 = scmp.eq.s32.totalorder %s37, 0
      %p379 = por %p377, %p378
      %s380 = ssub.s32 %s31, %s38
      %p381 = scmp.eq.s32.totalorder %s380, 0
      %s383 = sadd.s32 %s382, 1
      %s384 = scalar_select %p381, %s382, %s383
      %p387 = pneg %p381
      %p388 = scmp.eq.s32.totalorder %s31, 1
      %p389 = por %p387, %p388
      %p390 = scmp.ne.s32.totalorder %s382, %s385
      %p391 = scmp.eq.s32.totalorder %s31, 0
      %p392 = por %p390, %p391
      %p393 = scmp.ne.s32.totalorder %s382, %s385
      %p394 = scmp.eq.s32.totalorder %s36, 1
      %p395 = por %p393, %p394
      %p396 = scmp.ne.s32.totalorder %s385, %s386
      %p397 = scmp.eq.s32.totalorder %s36, 0
      %p398 = por %p396, %p397
      %p399 = scmp.ne.s32.totalorder %s385, %s386
      %p400 = scmp.eq.s32.totalorder %s37, 1
      %p401 = por %p399, %p400
      %p403 = scmp.ne.s32.totalorder %s386, %s402
      %p404 = scmp.eq.s32.totalorder %s37, 0
      %p405 = por %p403, %p404
      %s406 = ssub.s32 %s31, %s38
      %p407 = scmp.eq.s32.totalorder %s406, 0
      %s409 = sadd.s32 %s408, 1
      %s410 = scalar_select %p407, %s408, %s409
      %p413 = pneg %p407
      %p414 = scmp.eq.s32.totalorder %s31, 1
      %p415 = por %p413, %p414
      %p416 = scmp.ne.s32.totalorder %s408, %s411
      %p417 = scmp.eq.s32.totalorder %s31, 0
      %p418 = por %p416, %p417
      %p419 = scmp.ne.s32.totalorder %s408, %s411
      %p420 = scmp.eq.s32.totalorder %s36, 1
      %p421 = por %p419, %p420
      %p422 = scmp.ne.s32.totalorder %s411, %s412
      %p423 = scmp.eq.s32.totalorder %s36, 0
      %p424 = por %p422, %p423
      %p425 = scmp.ne.s32.totalorder %s411, %s412
      %p426 = scmp.eq.s32.totalorder %s37, 1
      %p427 = por %p425, %p426
      %p429 = scmp.ne.s32.totalorder %s412, %s428
      %p430 = scmp.eq.s32.totalorder %s37, 0
      %p431 = por %p429, %p430
      %s432 = ssub.s32 %s31, %s38
      %p433 = scmp.eq.s32.totalorder %s432, 0
      %s435 = sadd.s32 %s434, 1
      %s436 = scalar_select %p433, %s434, %s435
      %p439 = pneg %p433
      %p440 = scmp.eq.s32.totalorder %s31, 1
      %p441 = por %p439, %p440
      %p442 = scmp.ne.s32.totalorder %s434, %s437
      %p443 = scmp.eq.s32.totalorder %s31, 0
      %p444 = por %p442, %p443
      %p445 = scmp.ne.s32.totalorder %s434, %s437
      %p446 = scmp.eq.s32.totalorder %s36, 1
      %p447 = por %p445, %p446
      %p448 = scmp.ne.s32.totalorder %s437, %s438
      %p449 = scmp.eq.s32.totalorder %s36, 0
      %p450 = por %p448, %p449
      %p451 = scmp.ne.s32.totalorder %s437, %s438
      %p452 = scmp.eq.s32.totalorder %s37, 1
      %p453 = por %p451, %p452
      %p455 = scmp.ne.s32.totalorder %s438, %s454
      %p456 = scmp.eq.s32.totalorder %s37, 0
      %p457 = por %p455, %p456
      %p458 = scmp.le.s32.totalorder 1, %s31
      %p459 = scmp.lt.s32.totalorder %s31, 3
      %p460 = pnand %p458, %p459
      %p461 = pneg %p460
      // Predicated region
      $region9: #{tpu_custom_call.1} parent=5 // pred_check
        _
      $region10: #{tpu_custom_call.1} parent=5 // pred_check_branch
        %463 = sbr.rel (%p460) target = $region12
      $region11: #{tpu_custom_call.1} parent=5 // pred_region
        %s464 = ssub.s32 %s31, 1
        // Predicated region
        $region13: #{tpu_custom_call.1} parent=11 // pred_check
          %p465 = pneg %p78
        $region14: #{tpu_custom_call.1} parent=11 // pred_check_branch
          %467 = sbr.rel (%p465) target = $region16
        $region15: #{tpu_custom_call.1} parent=11 // pred_region
          _
        $region16: #{tpu_custom_call.1} parent=11 // pred_fallthru
          _
        // Predicated region
        $region17: #{tpu_custom_call.1} parent=11 // pred_check
          %p468 = pneg %p99
        $region18: #{tpu_custom_call.1} parent=11 // pred_check_branch
          %470 = sbr.rel (%p468) target = $region20
        $region19: #{tpu_custom_call.1} parent=11 // pred_region
          _
        $region20: #{tpu_custom_call.1} parent=11 // pred_fallthru
          _
        // Predicated region
        $region21: #{tpu_custom_call.1} parent=11 // pred_check
          %p471 = pneg %p120
        $region22: #{tpu_custom_call.1} parent=11 // pred_check_branch
          %473 = sbr.rel (%p471) target = $region24
        $region23: #{tpu_custom_call.1} parent=11 // pred_region
          _
        $region24: #{tpu_custom_call.1} parent=11 // pred_fallthru
          _
        // Predicated region
        $region25: #{tpu_custom_call.1} parent=11 // pred_check
          %p474 = pneg %p141
        $region26: #{tpu_custom_call.1} parent=11 // pred_check_branch
          %476 = sbr.rel (%p474) target = $region28
        $region27: #{tpu_custom_call.1} parent=11 // pred_region
          _
        $region28: #{tpu_custom_call.1} parent=11 // pred_fallthru
          _
        // Predicated region
        $region29: #{tpu_custom_call.1} parent=11 // pred_check
          %p477 = pneg %p162
        $region30: #{tpu_custom_call.1} parent=11 // pred_check_branch
          %479 = sbr.rel (%p477) target = $region32
        $region31: #{tpu_custom_call.1} parent=11 // pred_region
          _
        $region32: #{tpu_custom_call.1} parent=11 // pred_fallthru
          _
        // Predicated region
        $region33: #{tpu_custom_call.1} parent=11 // pred_check
          %p480 = pneg %p183
        $region34: #{tpu_custom_call.1} parent=11 // pred_check_branch
          %482 = sbr.rel (%p480) target = $region36
        $region35: #{tpu_custom_call.1} parent=11 // pred_region
          _
        $region36: #{tpu_custom_call.1} parent=11 // pred_fallthru
          _
        // Predicated region
        $region37: #{tpu_custom_call.1} parent=11 // pred_check
          %p483 = pneg %p204
        $region38: #{tpu_custom_call.1} parent=11 // pred_check_branch
          %485 = sbr.rel (%p483) target = $region40
        $region39: #{tpu_custom_call.1} parent=11 // pred_region
          _
        $region40: #{tpu_custom_call.1} parent=11 // pred_fallthru
          _
        // Predicated region
        $region41: #{tpu_custom_call.1} parent=11 // pred_check
          %p486 = pneg %p225
        $region42: #{tpu_custom_call.1} parent=11 // pred_check_branch
          %488 = sbr.rel (%p486) target = $region44
        $region43: #{tpu_custom_call.1} parent=11 // pred_region
          _
        $region44: #{tpu_custom_call.1} parent=11 // pred_fallthru
          _
        // Predicated region
        $region45: #{tpu_custom_call.1} parent=11 // pred_check
          %p489 = pneg %p246
        $region46: #{tpu_custom_call.1} parent=11 // pred_check_branch
          %491 = sbr.rel (%p489) target = $region48
        $region47: #{tpu_custom_call.1} parent=11 // pred_region
          _
        $region48: #{tpu_custom_call.1} parent=11 // pred_fallthru
          _
        // Predicated region
        $region49: #{tpu_custom_call.1} parent=11 // pred_check
          %p492 = pneg %p267
        $region50: #{tpu_custom_call.1} parent=11 // pred_check_branch
          %494 = sbr.rel (%p492) target = $region52
        $region51: #{tpu_custom_call.1} parent=11 // pred_region
          _
        $region52: #{tpu_custom_call.1} parent=11 // pred_fallthru
          _
        // Predicated region
        $region53: #{tpu_custom_call.1} parent=11 // pred_check
          %p495 = pneg %p288
        $region54: #{tpu_custom_call.1} parent=11 // pred_check_branch
          %497 = sbr.rel (%p495) target = $region56
        $region55: #{tpu_custom_call.1} parent=11 // pred_region
          _
        $region56: #{tpu_custom_call.1} parent=11 // pred_fallthru
          _
        // Predicated region
        $region57: #{tpu_custom_call.1} parent=11 // pred_check
          %p498 = pneg %p309
        $region58: #{tpu_custom_call.1} parent=11 // pred_check_branch
          %500 = sbr.rel (%p498) target = $region60
        $region59: #{tpu_custom_call.1} parent=11 // pred_region
          _
        $region60: #{tpu_custom_call.1} parent=11 // pred_fallthru
          _
        // Predicated region
        $region61: #{tpu_custom_call.1} parent=11 // pred_check
          %p501 = pneg %p330
        $region62: #{tpu_custom_call.1} parent=11 // pred_check_branch
          %503 = sbr.rel (%p501) target = $region64
        $region63: #{tpu_custom_call.1} parent=11 // pred_region
          _
        $region64: #{tpu_custom_call.1} parent=11 // pred_fallthru
          _
        // Predicated region
        $region65: #{tpu_custom_call.1} parent=11 // pred_check
          %p504 = pneg %p351
        $region66: #{tpu_custom_call.1} parent=11 // pred_check_branch
          %506 = sbr.rel (%p504) target = $region68
        $region67: #{tpu_custom_call.1} parent=11 // pred_region
          _
        $region68: #{tpu_custom_call.1} parent=11 // pred_fallthru
          _
        // Predicated region
        $region69: #{tpu_custom_call.1} parent=11 // pred_check
          %p507 = pneg %p372
        $region70: #{tpu_custom_call.1} parent=11 // pred_check_branch
          %509 = sbr.rel (%p507) target = $region72
        $region71: #{tpu_custom_call.1} parent=11 // pred_region
          _
        $region72: #{tpu_custom_call.1} parent=11 // pred_fallthru
          _
      $region12: #{tpu_custom_call.1} parent=5 // pred_fallthru
        _
      %p510 = scmp.lt.s32.totalorder %s31, 2
      // Predicated region
      $region73: #{tpu_custom_call.1} parent=5 // pred_check
        %p511 = pneg %p510
      $region74: #{tpu_custom_call.1} parent=5 // pred_check_branch
        %513 = sbr.rel (%p511) target = $region76
      $region75: #{tpu_custom_call.1} parent=5 // pred_region
        // Predicated region
        $region77: #{tpu_custom_call.1} parent=75 // pred_check
          %p514 = pneg %p51
        $region78: #{tpu_custom_call.1} parent=75 // pred_check_branch
          %516 = sbr.rel (%p514) target = $region80
        $region79: #{tpu_custom_call.1} parent=75 // pred_region
          %p517 = scmp.lt.s32.totalorder %s31, 1
          %s518 = scalar_select %p517, %s31, 1
          %s519 = smul.addr %s518, 8
          %s520 = scalar_lea.vmem %s0, %s519
        $region80: #{tpu_custom_call.1} parent=75 // pred_fallthru
          _
      $region76: #{tpu_custom_call.1} parent=5 // pred_fallthru
        _
      %p521 = scmp.le.s32.totalorder 1, %s31
      %p522 = scmp.lt.s32.totalorder %s31, 3
      %p523 = pnand %p521, %p522
      %p524 = pneg %p523
      // Predicated region
      $region81: #{tpu_custom_call.1} parent=5 // pred_check
        _
      $region82: #{tpu_custom_call.1} parent=5 // pred_check_branch
        %526 = sbr.rel (%p523) target = $region84
      $region83: #{tpu_custom_call.1} parent=5 // pred_region
        %s527 = ssub.s32 %s31, 1
        %p528 = scmp.lt.s32.totalorder %s36, 1
        %s529 = scalar_select %p528, %s36, 1
        %s530 = smul.addr %s529, 8
        %s531 = scalar_lea.vmem %s0, %s530
        %p532 = pneg %p57
        %p533 = pneg %p54
        %p534 = pneg %p78
        %p535 = pneg %p75
        %p536 = pneg %p99
        %p537 = pneg %p96
        %p538 = pneg %p120
        %p539 = pneg %p117
        %p540 = pneg %p141
        %p541 = pneg %p138
        %p542 = pneg %p162
        %p543 = pneg %p159
        %p544 = pneg %p183
        %p545 = pneg %p180
        %p546 = pneg %p204
        %p547 = pneg %p201
        %p548 = pneg %p225
        %p549 = pneg %p222
        %p550 = pneg %p246
        %p551 = pneg %p243
        %p552 = pneg %p267
        %p553 = pneg %p264
        %p554 = pneg %p288
        %p555 = pneg %p285
        %p556 = pneg %p309
        %p557 = pneg %p306
        %p558 = pneg %p330
        %p559 = pneg %p327
        %p560 = pneg %p351
        %p561 = pneg %p348
        %p562 = pneg %p372
        %p563 = pneg %p369
        %p564 = pneg %p398
        %p565 = pneg %p395
        %s566 = sand.u32 %s385, 1
        %s567 = scalar_lea.sflag [#allocation3], %s566
        %s568 = sand.u32 %s385, 1
        %s569 = smul.addr %s568, 8
        %s570 = scalar_lea.vmem [#allocation2], %s569
        %p571 = pneg %p424
        %p572 = pneg %p421
        %s573 = sand.u32 %s36, 1
        %s574 = scalar_lea.sflag [#allocation5], %s573
        %s575 = sand.u32 %s411, 1
        %s576 = smul.addr %s575, 8
        %s577 = scalar_lea.vmem [#allocation4], %s576
        %p578 = pneg %p450
        %p579 = pneg %p447
        %s580 = sand.u32 %s36, 1
        %s581 = scalar_lea.sflag [#allocation5], %s580
        %s582 = sand.u32 %s437, 1
        %s583 = smul.addr %s582, 8
        %s584 = scalar_lea.vmem [#allocation6], %s583
        %p585 = scmp.lt.s32.totalorder %s36, 1
        %s586 = scalar_select %p585, %s36, 1
        %s587 = smul.addr %s586, 8
        %s588 = scalar_lea.vmem %s0, %s587
        %v589 = vld [vmem:[%s588] sm:$0xff]
        %v590 = vld [vmem:[%s1] sm:$0xff]
        %v591 = vld [vmem:[%s1 + $0x8] sm:$0xff]
        %v592 = vld [vmem:[%s1 + $0x10] sm:$0xff]
        %v593 = vld [vmem:[%s1 + $0x18] sm:$0xff]
        %v594 = vld [vmem:[%s2] sm:$0x1]
        %v596 = vlaneseq
        %v597 = vshrl.u32 %v596, 7
        %v598 = vsub.s32 0, %v597
        %v599 = vrot.slane %v594, %v598
        %vm601 = vcmask 261120
        %v603 = vsel %vm601, %v589, 0
        %605 = vmatprep.subr.mxu0 0.0
        %606 = vmatpush1.msra.mxu0 %v590
        %607 = vmatprep.subr.mxu0 0.0
        %608 = vmatpush1.msra.mxu0 %v591
        %609 = vmatprep.subr.mxu0 0.0
        %610 = vmatpush1.msra.mxu0 %v592
        %611 = vmatprep.subr.mxu0 0.0
        %612 = vmatpush1.msra.mxu0 %v593
        %613 = vmatprep.subr.mxu0 0.0
        %614 = vmatpush1.msra.mxu0 0.0
        %615 = vmatprep.subr.mxu0 0.0
        %616 = vmatpush1.msra.mxu0 0.0
        %617 = vmatprep.subr.mxu0 0.0
        %618 = vmatpush1.msra.mxu0 0.0
        %619 = vmatprep.subr.mxu0 0.0
        %620 = vmatpush1.msra.mxu0 0.0
        %621 = vmatprep.subr.mxu0 0.0
        %622 = vmatpush1.msra.mxu0 0.0
        %623 = vmatprep.subr.mxu0 0.0
        %624 = vmatpush1.msra.mxu0 0.0
        %625 = vmatprep.subr.mxu0 0.0
        %626 = vmatpush1.msra.mxu0 0.0
        %627 = vmatprep.subr.mxu0 0.0
        %628 = vmatpush1.msra.mxu0 0.0
        %629 = vmatprep.subr.mxu0 0.0
        %630 = vmatpush1.msra.mxu0 0.0
        %631 = vmatprep.subr.mxu0 0.0
        %632 = vmatpush1.msra.mxu0 0.0
        %633 = vmatprep.subr.mxu0 0.0
        %634 = vmatpush1.msra.mxu0 0.0
        %635 = vmatprep.subr.mxu0 0.0
        %636 = vmatpush1.msra.mxu0 0.0
        %637 = vmatprep.subr.mxu0 0.0
        %638 = vmatpush1.msra.mxu0 0.0
        %639 = vmatprep.subr.mxu0 0.0
        %640 = vmatpush1.msra.mxu0 0.0
        %641 = vmatprep.subr.mxu0 0.0
        %642 = vmatpush1.msra.mxu0 0.0
        %643 = vmatprep.subr.mxu0 0.0
        %644 = vmatpush1.msra.mxu0 0.0
        %645 = vmatprep.subr.mxu0 0.0
        %646 = vmatpush1.msra.mxu0 0.0
        %647 = vmatprep.subr.mxu0 0.0
        %648 = vmatpush1.msra.mxu0 0.0
        %649 = vmatprep.subr.mxu0 0.0
        %650 = vmatpush1.msra.mxu0 0.0
        %651 = vmatprep.subr.mxu0 0.0
        %652 = vmatpush1.msra.mxu0 0.0
        %653 = vmatprep.subr.mxu0 0.0
        %654 = vmatpush1.msra.mxu0 0.0
        %655 = vmatprep.subr.mxu0 0.0
        %656 = vmatpush1.msra.mxu0 0.0
        %657 = vmatprep.subr.mxu0 0.0
        %658 = vmatpush1.msra.mxu0 0.0
        %659 = vmatprep.subr.mxu0 0.0
        %660 = vmatpush1.msra.mxu0 0.0
        %661 = vmatprep.subr.mxu0 0.0
        %662 = vmatpush1.msra.mxu0 0.0
        %663 = vmatprep.subr.mxu0 0.0
        %664 = vmatpush1.msra.mxu0 0.0
        %665 = vmatprep.subr.mxu0 0.0
        %666 = vmatpush1.msra.mxu0 0.0
        %667 = vmatprep.subr.mxu0 0.0
        %668 = vmatpush1.msra.mxu0 0.0
        %669 = vmatprep.mubr.f32.mxu0 0.0
        %670 = vmatmul.mubr.f32.gmra.mrb[0].mxu0 %v603
        %v671 = vpop.f32.mrb[0].mxu0
        %v672 = vadd.f32 %v599, %v671
        %v673 = vpop.f32.mrb[0].mxu0
        %674 = vdwg.mxu0
        %676 = vrot.lane.b32.xlu0 %v672, 96
        %v677 = vpop.permute.xlu0 %676
        %679 = vxpose.xlu0.b32.start [1/16] %v677, 128
        %680 = vxpose.xlu0.b32.cont [2/16] 0.0, 128
        %681 = vxpose.xlu0.b32.cont [3/16] 0.0, 128
        %682 = vxpose.xlu0.b32.cont [4/16] 0.0, 128
        %683 = vxpose.xlu0.b32.cont [5/16] 0.0, 128
        %684 = vxpose.xlu0.b32.cont [6/16] 0.0, 128
        %685 = vxpose.xlu0.b32.cont [7/16] 0.0, 128
        %686 = vxpose.xlu0.b32.cont [8/16] 0.0, 128
        %687 = vxpose.xlu0.b32.cont [9/16] 0.0, 128
        %688 = vxpose.xlu0.b32.cont [10/16] 0.0, 128
        %689 = vxpose.xlu0.b32.cont [11/16] 0.0, 128
        %690 = vxpose.xlu0.b32.cont [12/16] 0.0, 128
        %691 = vxpose.xlu0.b32.cont [13/16] 0.0, 128
        %692 = vxpose.xlu0.b32.cont [14/16] 0.0, 128
        %693 = vxpose.xlu0.b32.cont [15/16] 0.0, 128
        %694 = vxpose.xlu0.b32.end [16/16] 0.0, 128
        %v695 = vpop.trf.xlu0
        %v696 = vpop.trf.xlu0
        %v697 = vpop.trf.xlu0
        %v698 = vpop.trf.xlu0
        %v699 = vpop.trf.xlu0
        %v700 = vpop.trf.xlu0
        %v701 = vpop.trf.xlu0
        %v702 = vpop.trf.xlu0
        %v703 = vpop.trf.xlu0
        %v704 = vpop.trf.xlu0
        %v705 = vpop.trf.xlu0
        %v706 = vpop.trf.xlu0
        %v707 = vpop.trf.xlu0
        %v708 = vpop.trf.xlu0
        %v709 = vpop.trf.xlu0
        %v710 = vpop.trf.xlu0
        %711 = vrot.lane.b32.xlu0 %v672, 64
        %v712 = vpop.permute.xlu0 %711
        %vm714 = vcmask 64512
        %v716 = vsel %vm714, %v695, 0
        %v719 = vsel %vm714, %v696, 0
        %v722 = vsel %vm714, %v697, 0
        %v725 = vsel %vm714, %v698, 0
        %727 = vmatprep.subr.mxu0 0.0
        %728 = vmatpush1.msra.mxu0 %v712
        %729 = vmatprep.subr.mxu0 0.0
        %730 = vmatpush1.msra.mxu0 0.0
        %731 = vmatprep.subr.mxu0 0.0
        %732 = vmatpush1.msra.mxu0 0.0
        %733 = vmatprep.subr.mxu0 0.0
        %734 = vmatpush1.msra.mxu0 0.0
        %735 = vmatprep.subr.mxu0 0.0
        %736 = vmatpush1.msra.mxu0 0.0
        %737 = vmatprep.subr.mxu0 0.0
        %738 = vmatpush1.msra.mxu0 0.0
        %739 = vmatprep.subr.mxu0 0.0
        %740 = vmatpush1.msra.mxu0 0.0
        %741 = vmatprep.subr.mxu0 0.0
        %742 = vmatpush1.msra.mxu0 0.0
        %743 = vmatprep.subr.mxu0 0.0
        %744 = vmatpush1.msra.mxu0 0.0
        %745 = vmatprep.subr.mxu0 0.0
        %746 = vmatpush1.msra.mxu0 0.0
        %747 = vmatprep.subr.mxu0 0.0
        %748 = vmatpush1.msra.mxu0 0.0
        %749 = vmatprep.subr.mxu0 0.0
        %750 = vmatpush1.msra.mxu0 0.0
        %751 = vmatprep.subr.mxu0 0.0
        %752 = vmatpush1.msra.mxu0 0.0
        %753 = vmatprep.subr.mxu0 0.0
        %754 = vmatpush1.msra.mxu0 0.0
        %755 = vmatprep.subr.mxu0 0.0
        %756 = vmatpush1.msra.mxu0 0.0
        %757 = vmatprep.subr.mxu0 0.0
        %758 = vmatpush1.msra.mxu0 0.0
        %759 = vmatprep.subr.mxu0 0.0
        %760 = vmatpush1.msra.mxu0 0.0
        %761 = vmatprep.subr.mxu0 0.0
        %762 = vmatpush1.msra.mxu0 0.0
        %763 = vmatprep.subr.mxu0 0.0
        %764 = vmatpush1.msra.mxu0 0.0
        %765 = vmatprep.subr.mxu0 0.0
        %766 = vmatpush1.msra.mxu0 0.0
        %767 = vmatprep.subr.mxu0 0.0
        %768 = vmatpush1.msra.mxu0 0.0
        %769 = vmatprep.subr.mxu0 0.0
        %770 = vmatpush1.msra.mxu0 0.0
        %771 = vmatprep.subr.mxu0 0.0
        %772 = vmatpush1.msra.mxu0 0.0
        %773 = vmatprep.subr.mxu0 0.0
        %774 = vmatpush1.msra.mxu0 0.0
        %775 = vmatprep.subr.mxu0 0.0
        %776 = vmatpush1.msra.mxu0 0.0
        %777 = vmatprep.subr.mxu0 0.0
        %778 = vmatpush1.msra.mxu0 0.0
        %779 = vmatprep.subr.mxu0 0.0
        %780 = vmatpush1.msra.mxu0 0.0
        %781 = vmatprep.subr.mxu0 0.0
        %782 = vmatpush1.msra.mxu0 0.0
        %783 = vmatprep.subr.mxu0 0.0
        %784 = vmatpush1.msra.mxu0 0.0
        %785 = vmatprep.subr.mxu0 0.0
        %786 = vmatpush1.msra.mxu0 0.0
        %787 = vmatprep.subr.mxu0 0.0
        %788 = vmatpush1.msra.mxu0 0.0
        %789 = vmatprep.subr.mxu0 0.0
        %790 = vmatpush1.msra.mxu0 0.0
        %791 = vmatprep.mubr.f32.mxu0 0.0
        %792 = vmatmul.mubr.f32.gmra.mrb[0].mxu0 %v716
        %v793 = vpop.f32.mrb[0].mxu0
        %v794 = vadd.f32 0.0, %v793
        %v795 = vpop.f32.mrb[0].mxu0
        %796 = vmatprep.mubr.f32.mxu0 0.0
        %797 = vmatmul.mubr.f32.gmra.mrb[0].mxu0 %v719
        %v798 = vpop.f32.mrb[0].mxu0
        %v799 = vadd.f32 0.0, %v798
        %v800 = vpop.f32.mrb[0].mxu0
        %801 = vmatprep.mubr.f32.mxu0 0.0
        %802 = vmatmul.mubr.f32.gmra.mrb[0].mxu0 %v722
        %v803 = vpop.f32.mrb[0].mxu0
        %v804 = vadd.f32 0.0, %v803
        %v805 = vpop.f32.mrb[0].mxu0
        %806 = vmatprep.mubr.f32.mxu0 0.0
        %807 = vmatmul.mubr.f32.gmra.mrb[0].mxu0 %v725
        %v808 = vpop.f32.mrb[0].mxu0
        %v809 = vadd.f32 0.0, %v808
        %v810 = vpop.f32.mrb[0].mxu0
        %811 = vdwg.mxu0
        %v812 = vld [vmem:[%s3] sm:$0xff]
        %v813 = vld [vmem:[%s3 + $0x8] sm:$0xff]
        %v814 = vld [vmem:[%s3 + $0x10] sm:$0xff]
        %v815 = vld [vmem:[%s3 + $0x18] sm:$0xff]
        %v816 = vmul.f32 %v794, %v812
        %v817 = vmul.f32 %v799, %v813
        %v818 = vmul.f32 %v804, %v814
        %v819 = vmul.f32 %v809, %v815
        %v820 = vsel %vm601, %v672, 0
        %822 = vmatprep.subr.mxu0 0.0
        %823 = vmatpush1.msra.mxu0 %v816
        %824 = vmatprep.subr.mxu0 0.0
        %825 = vmatpush1.msra.mxu0 %v817
        %826 = vmatprep.subr.mxu0 0.0
        %827 = vmatpush1.msra.mxu0 %v818
        %828 = vmatprep.subr.mxu0 0.0
        %829 = vmatpush1.msra.mxu0 %v819
        %830 = vmatprep.subr.mxu0 0.0
        %831 = vmatpush1.msra.mxu0 0.0
        %832 = vmatprep.subr.mxu0 0.0
        %833 = vmatpush1.msra.mxu0 0.0
        %834 = vmatprep.subr.mxu0 0.0
        %835 = vmatpush1.msra.mxu0 0.0
        %836 = vmatprep.subr.mxu0 0.0
        %837 = vmatpush1.msra.mxu0 0.0
        %838 = vmatprep.subr.mxu0 0.0
        %839 = vmatpush1.msra.mxu0 0.0
        %840 = vmatprep.subr.mxu0 0.0
        %841 = vmatpush1.msra.mxu0 0.0
        %842 = vmatprep.subr.mxu0 0.0
        %843 = vmatpush1.msra.mxu0 0.0
        %844 = vmatprep.subr.mxu0 0.0
        %845 = vmatpush1.msra.mxu0 0.0
        %846 = vmatprep.subr.mxu0 0.0
        %847 = vmatpush1.msra.mxu0 0.0
        %848 = vmatprep.subr.mxu0 0.0
        %849 = vmatpush1.msra.mxu0 0.0
        %850 = vmatprep.subr.mxu0 0.0
        %851 = vmatpush1.msra.mxu0 0.0
        %852 = vmatprep.subr.mxu0 0.0
        %853 = vmatpush1.msra.mxu0 0.0
        %854 = vmatprep.subr.mxu0 0.0
        %855 = vmatpush1.msra.mxu0 0.0
        %856 = vmatprep.subr.mxu0 0.0
        %857 = vmatpush1.msra.mxu0 0.0
        %858 = vmatprep.subr.mxu0 0.0
        %859 = vmatpush1.msra.mxu0 0.0
        %860 = vmatprep.subr.mxu0 0.0
        %861 = vmatpush1.msra.mxu0 0.0
        %862 = vmatprep.subr.mxu0 0.0
        %863 = vmatpush1.msra.mxu0 0.0
        %864 = vmatprep.subr.mxu0 0.0
        %865 = vmatpush1.msra.mxu0 0.0
        %866 = vmatprep.subr.mxu0 0.0
        %867 = vmatpush1.msra.mxu0 0.0
        %868 = vmatprep.subr.mxu0 0.0
        %869 = vmatpush1.msra.mxu0 0.0
        %870 = vmatprep.subr.mxu0 0.0
        %871 = vmatpush1.msra.mxu0 0.0
        %872 = vmatprep.subr.mxu0 0.0
        %873 = vmatpush1.msra.mxu0 0.0
        %874 = vmatprep.subr.mxu0 0.0
        %875 = vmatpush1.msra.mxu0 0.0
        %876 = vmatprep.subr.mxu0 0.0
        %877 = vmatpush1.msra.mxu0 0.0
        %878 = vmatprep.subr.mxu0 0.0
        %879 = vmatpush1.msra.mxu0 0.0
        %880 = vmatprep.subr.mxu0 0.0
        %881 = vmatpush1.msra.mxu0 0.0
        %882 = vmatprep.subr.mxu0 0.0
        %883 = vmatpush1.msra.mxu0 0.0
        %884 = vmatprep.subr.mxu0 0.0
        %885 = vmatpush1.msra.mxu0 0.0
        %886 = vmatprep.mubr.f32.mxu0 0.0
        %887 = vmatmul.mubr.f32.gmra.mrb[0].mxu0 %v820
        %v888 = vpop.f32.mrb[0].mxu0
        %v889 = vadd.f32 0.0, %v888
        %v890 = vpop.f32.mrb[0].mxu0
        %891 = vdwg.mxu0
        %v892 = vld [vmem:[%s4] sm:$0xff]
        %v893 = vld [vmem:[%s4 + $0x8] sm:$0xff]
        %v894 = vld [vmem:[%s4 + $0x10] sm:$0xff]
        %v895 = vld [vmem:[%s4 + $0x18] sm:$0xff]
        %v896 = vld [vmem:[%s5] sm:$0x1]
        %v898 = vlaneseq
        %v899 = vshrl.u32 %v898, 7
        %v900 = vsub.s32 0, %v899
        %v901 = vrot.slane %v896, %v900
        %v904 = vsel %vm601, %v889, 0
        %906 = vmatprep.subr.mxu0 0.0
        %907 = vmatpush1.msra.mxu0 %v892
        %908 = vmatprep.subr.mxu0 0.0
        %909 = vmatpush1.msra.mxu0 %v893
        %910 = vmatprep.subr.mxu0 0.0
        %911 = vmatpush1.msra.mxu0 %v894
        %912 = vmatprep.subr.mxu0 0.0
        %913 = vmatpush1.msra.mxu0 %v895
        %914 = vmatprep.subr.mxu0 0.0
        %915 = vmatpush1.msra.mxu0 0.0
        %916 = vmatprep.subr.mxu0 0.0
        %917 = vmatpush1.msra.mxu0 0.0
        %918 = vmatprep.subr.mxu0 0.0
        %919 = vmatpush1.msra.mxu0 0.0
        %920 = vmatprep.subr.mxu0 0.0
        %921 = vmatpush1.msra.mxu0 0.0
        %922 = vmatprep.subr.mxu0 0.0
        %923 = vmatpush1.msra.mxu0 0.0
        %924 = vmatprep.subr.mxu0 0.0
        %925 = vmatpush1.msra.mxu0 0.0
        %926 = vmatprep.subr.mxu0 0.0
        %927 = vmatpush1.msra.mxu0 0.0
        %928 = vmatprep.subr.mxu0 0.0
        %929 = vmatpush1.msra.mxu0 0.0
        %930 = vmatprep.subr.mxu0 0.0
        %931 = vmatpush1.msra.mxu0 0.0
        %932 = vmatprep.subr.mxu0 0.0
        %933 = vmatpush1.msra.mxu0 0.0
        %934 = vmatprep.subr.mxu0 0.0
        %935 = vmatpush1.msra.mxu0 0.0
        %936 = vmatprep.subr.mxu0 0.0
        %937 = vmatpush1.msra.mxu0 0.0
        %938 = vmatprep.subr.mxu0 0.0
        %939 = vmatpush1.msra.mxu0 0.0
        %940 = vmatprep.subr.mxu0 0.0
        %941 = vmatpush1.msra.mxu0 0.0
        %942 = vmatprep.subr.mxu0 0.0
        %943 = vmatpush1.msra.mxu0 0.0
        %944 = vmatprep.subr.mxu0 0.0
        %945 = vmatpush1.msra.mxu0 0.0
        %946 = vmatprep.subr.mxu0 0.0
        %947 = vmatpush1.msra.mxu0 0.0
        %948 = vmatprep.subr.mxu0 0.0
        %949 = vmatpush1.msra.mxu0 0.0
        %950 = vmatprep.subr.mxu0 0.0
        %951 = vmatpush1.msra.mxu0 0.0
        %952 = vmatprep.subr.mxu0 0.0
        %953 = vmatpush1.msra.mxu0 0.0
        %954 = vmatprep.subr.mxu0 0.0
        %955 = vmatpush1.msra.mxu0 0.0
        %956 = vmatprep.subr.mxu0 0.0
        %957 = vmatpush1.msra.mxu0 0.0
        %958 = vmatprep.subr.mxu0 0.0
        %959 = vmatpush1.msra.mxu0 0.0
        %960 = vmatprep.subr.mxu0 0.0
        %961 = vmatpush1.msra.mxu0 0.0
        %962 = vmatprep.subr.mxu0 0.0
        %963 = vmatpush1.msra.mxu0 0.0
        %964 = vmatprep.subr.mxu0 0.0
        %965 = vmatpush1.msra.mxu0 0.0
        %966 = vmatprep.subr.mxu0 0.0
        %967 = vmatpush1.msra.mxu0 0.0
        %968 = vmatprep.subr.mxu0 0.0
        %969 = vmatpush1.msra.mxu0 0.0
        %970 = vmatprep.mubr.f32.mxu0 0.0
        %971 = vmatmul.mubr.f32.gmra.mrb[0].mxu0 %v904
        %v972 = vpop.f32.mrb[0].mxu0
        %v973 = vadd.f32 %v901, %v972
        %v974 = vpop.f32.mrb[0].mxu0
        %975 = vdwg.mxu0
        %v976 = vadd.f32 %v589, %v973
        %v977 = vld [vmem:[%s6] sm:$0x1]
        %v978 = vld [vmem:[%s7] sm:$0x1]
        %v979 = vsel %vm601, %v976, 0.0
        %980 = vadd.xlane.f32.xlu0 %v979
        %v981 = vpop.xlane.xlu0 %980
        %v982 = vrcp.pop 32.0
        %v983 = vmul.f32 %v981, %v982
        %v984 = vsub.f32 %v976, %v983
        %v985 = vmul.f32 %v984, %v984
        %v986 = vsel %vm601, %v985, 0.0
        %987 = vadd.xlane.f32.xlu0 %v986
        %v988 = vpop.xlane.xlu0 %987
        %v989 = vmul.f32 %v988, %v982
        %v990 = vadd.f32 %v989, 1e-05
        %v991 = vrsqrt.pop %v990
        %v992 = vmul.f32 %v984, %v991
        %v994 = vlaneseq
        %v995 = vshrl.u32 %v994, 7
        %v996 = vsub.s32 0, %v995
        %v997 = vrot.slane %v977, %v996
        %v999 = vmul.f32 %v992, %v997
        %v1001 = vlaneseq
        %v1002 = vshrl.u32 %v1001, 7
        %v1003 = vsub.s32 0, %v1002
        %v1004 = vrot.slane %v978, %v1003
        %v1006 = vadd.f32 %v999, %v1004
        %v1007 = vld [vmem:[%s8] sm:$0xff]
        %v1008 = vld [vmem:[%s8 + $0x8] sm:$0xff]
        %v1009 = vld [vmem:[%s8 + $0x10] sm:$0xff]
        %v1010 = vld [vmem:[%s8 + $0x18] sm:$0xff]
        %v1011 = vld [vmem:[%s9] sm:$0x1]
        %v1013 = vlaneseq
        %v1014 = vshrl.u32 %v1013, 7
        %v1015 = vsub.s32 0, %v1014
        %v1016 = vrot.slane %v1011, %v1015
        %v1019 = vsel %vm601, %v1006, 0
        %1021 = vmatprep.subr.mxu0 0.0
        %1022 = vmatpush1.msra.mxu0 %v1007
        %1023 = vmatprep.subr.mxu0 0.0
        %1024 = vmatpush1.msra.mxu0 %v1008
        %1025 = vmatprep.subr.mxu0 0.0
        %1026 = vmatpush1.msra.mxu0 %v1009
        %1027 = vmatprep.subr.mxu0 0.0
        %1028 = vmatpush1.msra.mxu0 %v1010
        %1029 = vmatprep.subr.mxu0 0.0
        %1030 = vmatpush1.msra.mxu0 0.0
        %1031 = vmatprep.subr.mxu0 0.0
        %1032 = vmatpush1.msra.mxu0 0.0
        %1033 = vmatprep.subr.mxu0 0.0
        %1034 = vmatpush1.msra.mxu0 0.0
        %1035 = vmatprep.subr.mxu0 0.0
        %1036 = vmatpush1.msra.mxu0 0.0
        %1037 = vmatprep.subr.mxu0 0.0
        %1038 = vmatpush1.msra.mxu0 0.0
        %1039 = vmatprep.subr.mxu0 0.0
        %1040 = vmatpush1.msra.mxu0 0.0
        %1041 = vmatprep.subr.mxu0 0.0
        %1042 = vmatpush1.msra.mxu0 0.0
        %1043 = vmatprep.subr.mxu0 0.0
        %1044 = vmatpush1.msra.mxu0 0.0
        %1045 = vmatprep.subr.mxu0 0.0
        %1046 = vmatpush1.msra.mxu0 0.0
        %1047 = vmatprep.subr.mxu0 0.0
        %1048 = vmatpush1.msra.mxu0 0.0
        %1049 = vmatprep.subr.mxu0 0.0
        %1050 = vmatpush1.msra.mxu0 0.0
        %1051 = vmatprep.subr.mxu0 0.0
        %1052 = vmatpush1.msra.mxu0 0.0
        %1053 = vmatprep.subr.mxu0 0.0
        %1054 = vmatpush1.msra.mxu0 0.0
        %1055 = vmatprep.subr.mxu0 0.0
        %1056 = vmatpush1.msra.mxu0 0.0
        %1057 = vmatprep.subr.mxu0 0.0
        %1058 = vmatpush1.msra.mxu0 0.0
        %1059 = vmatprep.subr.mxu0 0.0
        %1060 = vmatpush1.msra.mxu0 0.0
        %1061 = vmatprep.subr.mxu0 0.0
        %1062 = vmatpush1.msra.mxu0 0.0
        %1063 = vmatprep.subr.mxu0 0.0
        %1064 = vmatpush1.msra.mxu0 0.0
        %1065 = vmatprep.subr.mxu0 0.0
        %1066 = vmatpush1.msra.mxu0 0.0
        %1067 = vmatprep.subr.mxu0 0.0
        %1068 = vmatpush1.msra.mxu0 0.0
        %1069 = vmatprep.subr.mxu0 0.0
        %1070 = vmatpush1.msra.mxu0 0.0
        %1071 = vmatprep.subr.mxu0 0.0
        %1072 = vmatpush1.msra.mxu0 0.0
        %1073 = vmatprep.subr.mxu0 0.0
        %1074 = vmatpush1.msra.mxu0 0.0
        %1075 = vmatprep.subr.mxu0 0.0
        %1076 = vmatpush1.msra.mxu0 0.0
        %1077 = vmatprep.subr.mxu0 0.0
        %1078 = vmatpush1.msra.mxu0 0.0
        %1079 = vmatprep.subr.mxu0 0.0
        %1080 = vmatpush1.msra.mxu0 0.0
        %1081 = vmatprep.subr.mxu0 0.0
        %1082 = vmatpush1.msra.mxu0 0.0
        %1083 = vmatprep.subr.mxu0 0.0
        %1084 = vmatpush1.msra.mxu0 0.0
        %1085 = vmatprep.mubr.f32.mxu0 0.0
        %1086 = vmatmul.mubr.f32.gmra.mrb[0].mxu0 %v1019
        %v1087 = vpop.f32.mrb[0].mxu0
        %v1088 = vadd.f32 %v1016, %v1087
        %v1089 = vpop.f32.mrb[0].mxu0
        %1090 = vdwg.mxu0
        %v1091 = vmax.f32 %v1088, 0.0
        %v1092 = vld [vmem:[%s10] sm:$0xff]
        %v1093 = vld [vmem:[%s10 + $0x8] sm:$0xff]
        %v1094 = vld [vmem:[%s10 + $0x10] sm:$0xff]
        %v1095 = vld [vmem:[%s10 + $0x18] sm:$0xff]
        %v1096 = vld [vmem:[%s10 + $0x20] sm:$0xff]
        %v1097 = vld [vmem:[%s10 + $0x28] sm:$0xff]
        %v1098 = vld [vmem:[%s10 + $0x30] sm:$0xff]
        %v1099 = vld [vmem:[%s10 + $0x38] sm:$0xff]
        %v1100 = vld [vmem:[%s10 + $0x40] sm:$0xff]
        %v1101 = vld [vmem:[%s10 + $0x48] sm:$0xff]
        %v1102 = vld [vmem:[%s10 + $0x50] sm:$0xff]
        %v1103 = vld [vmem:[%s10 + $0x58] sm:$0xff]
        %v1104 = vld [vmem:[%s10 + $0x60] sm:$0xff]
        %v1105 = vld [vmem:[%s10 + $0x68] sm:$0xff]
        %v1106 = vld [vmem:[%s10 + $0x70] sm:$0xff]
        %v1107 = vld [vmem:[%s10 + $0x78] sm:$0xff]
        %v1108 = vld [vmem:[%s11] sm:$0x1]
        %v1110 = vlaneseq
        %v1111 = vshrl.u32 %v1110, 7
        %v1112 = vsub.s32 0, %v1111
        %v1113 = vrot.slane %v1108, %v1112
        %1115 = vmatprep.subr.mxu0 0.0
        %1116 = vmatpush1.msra.mxu0 %v1092
        %1117 = vmatprep.subr.mxu0 0.0
        %1118 = vmatpush1.msra.mxu0 %v1093
        %1119 = vmatprep.subr.mxu0 0.0
        %1120 = vmatpush1.msra.mxu0 %v1094
        %1121 = vmatprep.subr.mxu0 0.0
        %1122 = vmatpush1.msra.mxu0 %v1095
        %1123 = vmatprep.subr.mxu0 0.0
        %1124 = vmatpush1.msra.mxu0 %v1096
        %1125 = vmatprep.subr.mxu0 0.0
        %1126 = vmatpush1.msra.mxu0 %v1097
        %1127 = vmatprep.subr.mxu0 0.0
        %1128 = vmatpush1.msra.mxu0 %v1098
        %1129 = vmatprep.subr.mxu0 0.0
        %1130 = vmatpush1.msra.mxu0 %v1099
        %1131 = vmatprep.subr.mxu0 0.0
        %1132 = vmatpush1.msra.mxu0 %v1100
        %1133 = vmatprep.subr.mxu0 0.0
        %1134 = vmatpush1.msra.mxu0 %v1101
        %1135 = vmatprep.subr.mxu0 0.0
        %1136 = vmatpush1.msra.mxu0 %v1102
        %1137 = vmatprep.subr.mxu0 0.0
        %1138 = vmatpush1.msra.mxu0 %v1103
        %1139 = vmatprep.subr.mxu0 0.0
        %1140 = vmatpush1.msra.mxu0 %v1104
        %1141 = vmatprep.subr.mxu0 0.0
        %1142 = vmatpush1.msra.mxu0 %v1105
        %1143 = vmatprep.subr.mxu0 0.0
        %1144 = vmatpush1.msra.mxu0 %v1106
        %1145 = vmatprep.subr.mxu0 0.0
        %1146 = vmatpush1.msra.mxu0 %v1107
        %1147 = vmatprep.subr.mxu0 0.0
        %1148 = vmatpush1.msra.mxu0 0.0
        %1149 = vmatprep.subr.mxu0 0.0
        %1150 = vmatpush1.msra.mxu0 0.0
        %1151 = vmatprep.subr.mxu0 0.0
        %1152 = vmatpush1.msra.mxu0 0.0
        %1153 = vmatprep.subr.mxu0 0.0
        %1154 = vmatpush1.msra.mxu0 0.0
        %1155 = vmatprep.subr.mxu0 0.0
        %1156 = vmatpush1.msra.mxu0 0.0
        %1157 = vmatprep.subr.mxu0 0.0
        %1158 = vmatpush1.msra.mxu0 0.0
        %1159 = vmatprep.subr.mxu0 0.0
        %1160 = vmatpush1.msra.mxu0 0.0
        %1161 = vmatprep.subr.mxu0 0.0
        %1162 = vmatpush1.msra.mxu0 0.0
        %1163 = vmatprep.subr.mxu0 0.0
        %1164 = vmatpush1.msra.mxu0 0.0
        %1165 = vmatprep.subr.mxu0 0.0
        %1166 = vmatpush1.msra.mxu0 0.0
        %1167 = vmatprep.subr.mxu0 0.0
        %1168 = vmatpush1.msra.mxu0 0.0
        %1169 = vmatprep.subr.mxu0 0.0
        %1170 = vmatpush1.msra.mxu0 0.0
        %1171 = vmatprep.subr.mxu0 0.0
        %1172 = vmatpush1.msra.mxu0 0.0
        %1173 = vmatprep.subr.mxu0 0.0
        %1174 = vmatpush1.msra.mxu0 0.0
        %1175 = vmatprep.subr.mxu0 0.0
        %1176 = vmatpush1.msra.mxu0 0.0
        %1177 = vmatprep.subr.mxu0 0.0
        %1178 = vmatpush1.msra.mxu0 0.0
        %1179 = vmatprep.mubr.f32.mxu0 0.0
        %1180 = vmatmul.mubr.f32.gmra.mrb[0].mxu0 %v1091
        %v1181 = vpop.f32.mrb[0].mxu0
        %v1182 = vadd.f32 %v1113, %v1181
        %v1183 = vpop.f32.mrb[0].mxu0
        %1184 = vdwg.mxu0
        %v1185 = vadd.f32 %v1006, %v1182
        %v1186 = vld [vmem:[%s12] sm:$0x1]
        %v1187 = vld [vmem:[%s13] sm:$0x1]
        %v1188 = vsel %vm601, %v1185, 0.0
        %1189 = vadd.xlane.f32.xlu0 %v1188
        %v1190 = vpop.xlane.xlu0 %1189
        %v1191 = vmul.f32 %v1190, %v982
        %v1192 = vsub.f32 %v1185, %v1191
        %v1193 = vmul.f32 %v1192, %v1192
        %v1194 = vsel %vm601, %v1193, 0.0
        %1195 = vadd.xlane.f32.xlu0 %v1194
        %v1196 = vpop.xlane.xlu0 %1195
        %v1197 = vmul.f32 %v1196, %v982
        %v1198 = vadd.f32 %v1197, 1e-05
        %v1199 = vrsqrt.pop %v1198
        %v1200 = vmul.f32 %v1192, %v1199
        %v1202 = vlaneseq
        %v1203 = vshrl.u32 %v1202, 7
        %v1204 = vsub.s32 0, %v1203
        %v1205 = vrot.slane %v1186, %v1204
        %v1207 = vmul.f32 %v1200, %v1205
        %v1209 = vlaneseq
        %v1210 = vshrl.u32 %v1209, 7
        %v1211 = vsub.s32 0, %v1210
        %v1212 = vrot.slane %v1187, %v1211
        %v1214 = vadd.f32 %v1207, %v1212
        %v1215 = vadd.f32 %v1006, %v1214
        %v1216 = vld [vmem:[%s14] sm:$0x1]
        %v1217 = vld [vmem:[%s15] sm:$0x1]
        %v1218 = vsel %vm601, %v1215, 0.0
        %1219 = vadd.xlane.f32.xlu0 %v1218
        %v1220 = vpop.xlane.xlu0 %1219
        %v1221 = vmul.f32 %v1220, %v982
        %v1222 = vsub.f32 %v1215, %v1221
        %v1223 = vmul.f32 %v1222, %v1222
        %v1224 = vsel %vm601, %v1223, 0.0
        %1225 = vadd.xlane.f32.xlu0 %v1224
        %v1226 = vpop.xlane.xlu0 %1225
        %v1227 = vmul.f32 %v1226, %v982
        %v1228 = vadd.f32 %v1227, 1e-05
        %v1229 = vrsqrt.pop %v1228
        %v1230 = vmul.f32 %v1222, %v1229
        %v1232 = vlaneseq
        %v1233 = vshrl.u32 %v1232, 7
        %v1234 = vsub.s32 0, %v1233
        %v1235 = vrot.slane %v1216, %v1234
        %v1237 = vmul.f32 %v1230, %v1235
        %v1239 = vlaneseq
        %v1240 = vshrl.u32 %v1239, 7
        %v1241 = vsub.s32 0, %v1240
        %v1242 = vrot.slane %v1217, %v1241
        %v1244 = vadd.f32 %v1237, %v1242
        %1245 = vst.msk [vmem:[%s570] sm:$0xff] %vm601, %v1244
        %1246 = vst.msk [vmem:[%s577] sm:$0xff] %vm601, %v677
        %1247 = vst.msk [vmem:[%s584] sm:$0xff] %vm601, %v712
        %s1248 = sand.u32 %s385, 1
        %s1249 = scalar_lea.sflag [#allocation3], %s1248
        %s1250 = sand.u32 %s385, 1
        %s1251 = smul.addr %s1250, 8
        %s1252 = scalar_lea.vmem [#allocation2], %s1251
        %s1253 = sand.u32 %s36, 1
        %s1254 = scalar_lea.sflag [#allocation5], %s1253
        %s1255 = sand.u32 %s411, 1
        %s1256 = smul.addr %s1255, 8
        %s1257 = scalar_lea.vmem [#allocation4], %s1256
        %s1258 = sand.u32 %s36, 1
        %s1259 = scalar_lea.sflag [#allocation5], %s1258
        %s1260 = sand.u32 %s437, 1
        %s1261 = smul.addr %s1260, 8
        %s1262 = scalar_lea.vmem [#allocation6], %s1261
        // Predicated region
        $region85: #{tpu_custom_call.1} parent=83 // pred_check
          %p1263 = pneg %p395
        $region86: #{tpu_custom_call.1} parent=83 // pred_check_branch
          %1265 = sbr.rel (%p1263) target = $region88
        $region87: #{tpu_custom_call.1} parent=83 // pred_region
          %s1267 = ssub.s32 128, 128
          %1268 = vsyncadd %s1249, %s1267
          %s1269 = smul.addr %s36, 128
          %s1270 = scalar_lea.hbm %s16, %s1269
          %s1272 = sshll.u32 %s1252, 4
          %s1273 = int_to_ptr.vmem [resolvable:$true] %s1272
          %1275 = dma.vmem_to_hbm [thread:$0]  %s1273, 128, %s1270, %s1249
        $region88: #{tpu_custom_call.1} parent=83 // pred_fallthru
          _
        // Predicated region
        $region89: #{tpu_custom_call.1} parent=83 // pred_check
          %p1276 = pneg %p421
        $region90: #{tpu_custom_call.1} parent=83 // pred_check_branch
          %1278 = sbr.rel (%p1276) target = $region92
        $region91: #{tpu_custom_call.1} parent=83 // pred_region
          %s1280 = ssub.s32 128, 128
          %1281 = vsyncadd %s1254, %s1280
          %s1282 = smul.addr %s36, 128
          %s1283 = scalar_lea.hbm %s17, %s1282
          %s1285 = sshll.u32 %s1257, 4
          %s1286 = int_to_ptr.vmem [resolvable:$true] %s1285
          %1288 = dma.vmem_to_hbm [thread:$0]  %s1286, 128, %s1283, %s1254
        $region92: #{tpu_custom_call.1} parent=83 // pred_fallthru
          _
        // Predicated region
        $region93: #{tpu_custom_call.1} parent=83 // pred_check
          %p1289 = pneg %p447
        $region94: #{tpu_custom_call.1} parent=83 // pred_check_branch
          %1291 = sbr.rel (%p1289) target = $region96
        $region95: #{tpu_custom_call.1} parent=83 // pred_region
          %s1293 = ssub.s32 128, 128
          %1294 = vsyncadd %s1259, %s1293
          %s1295 = smul.addr %s36, 128
          %s1296 = scalar_lea.hbm %s18, %s1295
          %s1298 = sshll.u32 %s1262, 4
          %s1299 = int_to_ptr.vmem [resolvable:$true] %s1298
          %1301 = dma.vmem_to_hbm [thread:$0]  %s1299, 128, %s1296, %s1259
        $region96: #{tpu_custom_call.1} parent=83 // pred_fallthru
          _
      $region84: #{tpu_custom_call.1} parent=5 // pred_fallthru
        _
      %p1302 = scmp.le.s32.totalorder 2, %s31
      // Predicated region
      $region97: #{tpu_custom_call.1} parent=5 // pred_check
        %p1303 = pneg %p1302
      $region98: #{tpu_custom_call.1} parent=5 // pred_check_branch
        %1305 = sbr.rel (%p1303) target = $region100
      $region99: #{tpu_custom_call.1} parent=5 // pred_region
        %s1306 = ssub.s32 %s31, 2
        // Predicated region
        $region101: #{tpu_custom_call.1} parent=99 // pred_check
          %p1307 = pneg %p401
        $region102: #{tpu_custom_call.1} parent=99 // pred_check_branch
          %1309 = sbr.rel (%p1307) target = $region104
        $region103: #{tpu_custom_call.1} parent=99 // pred_region
          %s1310 = sand.u32 %s386, 1
          %s1311 = scalar_lea.sflag [#allocation3], %s1310
          %s1312 = sand.u32 %s386, 1
          %s1313 = smul.addr %s1312, 8
          %s1314 = scalar_lea.vmem [#allocation2], %s1313
          %1315 = dma.done %s1311, 128
        $region104: #{tpu_custom_call.1} parent=99 // pred_fallthru
          _
        // Predicated region
        $region105: #{tpu_custom_call.1} parent=99 // pred_check
          %p1316 = pneg %p427
        $region106: #{tpu_custom_call.1} parent=99 // pred_check_branch
          %1318 = sbr.rel (%p1316) target = $region108
        $region107: #{tpu_custom_call.1} parent=99 // pred_region
          %s1319 = sand.u32 %s37, 1
          %s1320 = scalar_lea.sflag [#allocation5], %s1319
          %s1321 = sand.u32 %s412, 1
          %s1322 = smul.addr %s1321, 8
          %s1323 = scalar_lea.vmem [#allocation4], %s1322
          %1324 = dma.done %s1320, 128
        $region108: #{tpu_custom_call.1} parent=99 // pred_fallthru
          _
        // Predicated region
        $region109: #{tpu_custom_call.1} parent=99 // pred_check
          %p1325 = pneg %p453
        $region110: #{tpu_custom_call.1} parent=99 // pred_check_branch
          %1327 = sbr.rel (%p1325) target = $region112
        $region111: #{tpu_custom_call.1} parent=99 // pred_region
          %s1328 = sand.u32 %s37, 1
          %s1329 = scalar_lea.sflag [#allocation5], %s1328
          %s1330 = sand.u32 %s438, 1
          %s1331 = smul.addr %s1330, 8
          %s1332 = scalar_lea.vmem [#allocation6], %s1331
          %1333 = dma.done %s1329, 128
        $region112: #{tpu_custom_call.1} parent=99 // pred_fallthru
          _
      $region100: #{tpu_custom_call.1} parent=5 // pred_fallthru
        _
    $region6: #{tpu_custom_call.1} parent=1 // loop_footer
      %s35 = sadd.s32 1, %s31
    $region7: #{tpu_custom_call.1} parent=1 // loop_footer_branch
      %30 = sbr.rel target = $region3
    $region8: #{tpu_custom_call.1} parent=1 // loop_exit
      _
    %1334 = vsyncpa [#allocation3], 1
    %s1335 = scalar_lea.sflag [#allocation3], 1
    %1336 = vsyncpa %s1335, 1
    %1337 = vsyncpa [#allocation5], 1
    %s1338 = scalar_lea.sflag [#allocation5], 1
    %1339 = vsyncpa %s1338, 1

</llo_original>
